<compile_context>
chip_gen: v7x
topology: tpu7x:2x2x1
jax: 0.10.0
libtpu: 0.0.40
codegen_flags: <defaults>
</compile_context>

<pallas_src>
import functools

import jax
import jax.numpy as jnp
from jax import lax
from jax.experimental import pallas as pl
from jax.experimental.pallas import tpu as pltpu


# ----------------------------------------------------------------------------
# Static network geometry (nn.Conv2d(1,6,3) -> pool2 -> nn.Conv2d(6,16,3) -> pool2)
# ----------------------------------------------------------------------------
_H = _W = 28            # required input spatial size (so flatten is 16*5*5)
_C1, _C2 = 6, 16        # conv output channels
_OH1 = _OW1 = 26        # conv1 output spatial
_PH1 = _PW1 = 13        # pool1 output spatial
_OH2 = _OW2 = 11        # conv2 output spatial
_PH2 = _PW2 = 5         # pool2 output spatial
_NCLS = 10
_NPAD = 128             # lane-dense padded width of the final output slab


def _round_up(n, m):
    return ((n + m - 1) // m) * m


# ----------------------------------------------------------------------------
# The single fused Pallas kernel
# ----------------------------------------------------------------------------
def _fused_forward_kernel(x_ref, w1_ref, b1_ref, s1r_ref, s1c_ref,
                          w2_ref, b2_ref, s2r_ref, s2c_ref,
                          wf1_ref, bf1_ref, wf2_ref, bf2_ref,
                          wf3_ref, bf3_ref, o_ref,
                          *, rows1, rows2, rows_g):
    """Whole FashionMnistNet forward on VMEM-resident 2-D slabs.

    rows1 = batch*28 (conv1 computed rows), rows2 = batch*13 (conv2 computed
    rows), rows_g = padded row count carried through the fc layers.
    Rows beyond the per-image valid region hold harmless garbage/zeros and are
    never selected by the pooling matrices or the final host-side slice.
    """
    f32 = jnp.float32

    def mm(a, b):
        return jnp.dot(a, b, preferred_element_type=f32)

    # ---- conv1 (1->6, 3x3, valid) + bias + ReLU:  one MXU matmul -------------
    x = x_ref[...]                                                  # (rows1+pad, 28)
    a1 = jnp.concatenate([x[i:i + rows1, :] for i in range(3)], axis=1)
    h1 = jnp.maximum(mm(a1, w1_ref[...]) + b1_ref[...], 0.0)        # (rows1, 26*6)

    # ---- pool1 (2x2, stride 2): shifted elementwise max + 0/1 down-select ----
    rmax = jnp.maximum(h1[:rows1 - 1, :], h1[1:, :])                # adjacent rows
    cmax = jnp.maximum(rmax[:, :(_OW1 - 1) * _C1], rmax[:, _C1:])   # adjacent w
    p1 = mm(mm(s1r_ref[...], cmax), s1c_ref[...])                   # (rows2+pad, 13*6)

    # ---- conv2 (6->16, 3x3, valid) + bias + ReLU -----------------------------
    a2 = jnp.concatenate([p1[i:i + rows2, :] for i in range(3)], axis=1)
    h2 = jnp.maximum(mm(a2, w2_ref[...]) + b2_ref[...], 0.0)        # (rows2, 11*16)

    # ---- pool2 (2x2, stride 2) ----------------------------------------------
    rmax2 = jnp.maximum(h2[:rows2 - 1, :], h2[1:, :])
    cmax2 = jnp.maximum(rmax2[:, :(_OW2 - 1) * _C2], rmax2[:, _C2:])
    p2 = mm(mm(s2r_ref[...], cmax2), s2c_ref[...])                  # (pad, 5*16)

    # ---- flatten in (h, w, c) order (fc1 weights are pre-permuted to match) --
    g = jnp.concatenate([p2[ph:ph + rows_g, :] for ph in range(_PH2)], axis=1)

    # ---- fc1 / fc2 (ReLU) and fc3 (zero-padded to 128 lanes -> dense store) --
    z = jnp.maximum(mm(g, wf1_ref[...]) + bf1_ref[...], 0.0)        # (rows_g, 120)
    z = jnp.maximum(mm(z, wf2_ref[...]) + bf2_ref[...], 0.0)        # (rows_g, 84)
    o_ref[...] = mm(z, wf3_ref[...]) + bf3_ref[...]                 # (rows_g, 128)


# ----------------------------------------------------------------------------
# One-time parameter packing (done at init, NOT in the hot path)
# ----------------------------------------------------------------------------
def _conv_as_matrix(w_oihw, in_w, out_w):
    """Fold a 3x3 conv's kw taps + channel mixing into one block-Toeplitz
    matrix of shape (3*in_w*IC, out_w*OC).  The remaining kh shifts are done
    in-kernel by concatenating three row-shifted slices of the input slab."""
    oc, ic, kh, kw = w_oihw.shape
    blocks = []
    for i in range(kh):
        m = jnp.zeros((in_w, ic, out_w, oc), jnp.float32)
        for j in range(kw):
            diag = jnp.eye(in_w, out_w, k=-j, dtype=jnp.float32)  # w_in == w_out + j
            m = m + jnp.einsum("pq,co->pcqo", diag, w_oihw[:, :, i, j].T)
        blocks.append(m.reshape(in_w * ic, out_w * oc))
    return jnp.concatenate(blocks, axis=0)


def _pool_row_select(batch, row_stride, out_h, rows_pad):
    """0/1 matrix picking rows b*row_stride + 2*ph out of the adjacent-row-max
    slab (zero-padding the result up to rows_pad rows)."""
    idx = jnp.arange(batch * out_h)
    src = (idx // out_h) * row_stride + 2 * (idx % out_h)
    s = jnp.zeros((rows_pad, batch * row_stride - 1), jnp.float32)
    return s.at[idx, src].set(1.0)


def _pool_col_select(in_lanes, out_w, ch):
    """0/1 matrix picking lanes 2*pw*ch + c out of the adjacent-w-max slab."""
    idx = jnp.arange(out_w * ch)
    src = 2 * (idx // ch) * ch + (idx % ch)
    s = jnp.zeros((in_lanes, out_w * ch), jnp.float32)
    return s.at[src, idx].set(1.0)


def make_fashion_mnist_forward(params, batch):
    """Pack PyTorch-layout params once and return forward(x_nchw) -> (batch, 10)."""
    rows1 = batch * _H                                    # conv1/pool1 source rows
    rows2 = batch * _PH1                                  # conv2/pool2 source rows
    rows_g = _round_up((batch - 1) * _PH2 + 1, 8)         # rows carried through fcs
    rows0_pad = _round_up(rows1 + 2, 8)                   # padded input slab rows
    rows1_pad = _round_up(rows2 + 2, 8)                   # padded pool1 slab rows
    rows2_pad = _round_up(max(batch * _PH2, rows_g + _PH2 - 1), 8)

    # Conv weights folded into block-Toeplitz matrices; biases tiled over width.
    w1 = _conv_as_matrix(params["conv1_w"], _W, _OW1)              # (84, 156)
    b1 = jnp.tile(params["conv1_b"], _OW1)[None, :]                # (1, 156)
    w2 = _conv_as_matrix(params["conv2_w"], _PW1, _OW2)            # (234, 176)
    b2 = jnp.tile(params["conv2_b"], _OW2)[None, :]                # (1, 176)

    # Pool down-selection matrices (the linear part of 2x2/2 max pooling).
    s1r = _pool_row_select(batch, _H, _PH1, rows1_pad)             # (32, 55)
    s1c = _pool_col_select((_OW1 - 1) * _C1, _PW1, _C1)            # (150, 78)
    s2r = _pool_row_select(batch, _PH1, _PH2, rows2_pad)           # (16, 25)
    s2c = _pool_col_select((_OW2 - 1) * _C2, _PW2, _C2)            # (160, 80)

    # FC weights pre-transposed to (K, N).  fc1 rows are permuted from
    # PyTorch's (c, h, w) flatten order to this kernel's (h, w, c) order.
    wf1 = jnp.transpose(params["fc1_w"].reshape(120, _C2, _PH2, _PW2),
                        (2, 3, 1, 0)).reshape(_C2 * _PH2 * _PW2, 120)
    bf1 = params["fc1_b"][None, :]
    wf2 = jnp.transpose(params["fc2_w"])                           # (120, 84)
    bf2 = params["fc2_b"][None, :]
    wf3 = jnp.pad(jnp.transpose(params["fc3_w"]),                  # (84, 128)
                  ((0, 0), (0, _NPAD - _NCLS)))
    bf3 = jnp.pad(params["fc3_b"], (0, _NPAD - _NCLS))[None, :]

    consts = (w1, b1, s1r, s1c, w2, b2, s2r, s2c,
              wf1, bf1, wf2, bf2, wf3, bf3)

    kernel = functools.partial(_fused_forward_kernel,
                               rows1=rows1, rows2=rows2, rows_g=rows_g)
    # Working set (weights + activations) is < 1 MiB: far below the VMEM of
    # every TPU generation (incl. v7x's 64 MiB), so everything is a single
    # full-array VMEM block and there is no grid.
    fused = pl.pallas_call(
        kernel,
        out_shape=jax.ShapeDtypeStruct((rows_g, _NPAD), jnp.float32),
        in_specs=[pl.BlockSpec(memory_space=pltpu.MemorySpace.VMEM)
                  for _ in range(1 + len(consts))],
        out_specs=pl.BlockSpec(memory_space=pltpu.MemorySpace.VMEM),
    )

    def forward(x_nchw):
        assert x_nchw.shape == (batch, 1, _H, _W)
        # (B,1,28,28) -> (B*28, 28) row-stacked slab, zero-padded a few rows
        # so the kernel's 3 row-shifted slices stay in bounds.
        x2d = x_nchw.reshape(batch * _H, _W)
        x2d = jnp.pad(x2d, ((0, rows0_pad - batch * _H), (0, 0)))
        slab = fused(x2d, *consts)
        # Image b sits at slab row b*5; the logits are the first 10 lanes.
        return slab[0::_PH2][:batch, :_NCLS]

    return forward


# ----------------------------------------------------------------------------
# Pure-JAX reference (PyTorch semantics) for a loose numerical self-check
# ----------------------------------------------------------------------------
def reference_forward(params, x_nchw):
    hi = lax.Precision.HIGHEST
    x = jnp.transpose(x_nchw, (0, 2, 3, 1))

    def conv_relu(x, w, b):
        y = lax.conv_general_dilated(
            x, jnp.transpose(w, (2, 3, 1, 0)), (1, 1), "VALID",
            dimension_numbers=("NHWC", "HWIO", "NHWC"), precision=hi)
        return jnp.maximum(y + b, 0.0)

    def pool(x):
        b, h, w, c = x.shape
        x = x[:, : 2 * (h // 2), : 2 * (w // 2), :]
        return x.reshape(b, h // 2, 2, w // 2, 2, c).max(axis=(2, 4))

    x = pool(conv_relu(x, params["conv1_w"], params["conv1_b"]))
    x = pool(conv_relu(x, params["conv2_w"], params["conv2_b"]))
    flat = jnp.transpose(x, (0, 3, 1, 2)).reshape(x.shape[0], -1)   # NCHW flatten
    h = jnp.maximum(flat @ params["fc1_w"].T + params["fc1_b"], 0.0)
    h = jnp.maximum(h @ params["fc2_w"].T + params["fc2_b"], 0.0)
    return h @ params["fc3_w"].T + params["fc3_b"]


# ----------------------------------------------------------------------------
# Deterministic parameter init (PyTorch-style uniform(-1/sqrt(fan_in), ...))
# ----------------------------------------------------------------------------
def init_params(key):
    ks = jax.random.split(key, 10)

    def u(k, shape, fan_in):
        bound = 1.0 / float(fan_in) ** 0.5
        return jax.random.uniform(k, shape, jnp.float32, -bound, bound)

    return {
        "conv1_w": u(ks[0], (6, 1, 3, 3), 1 * 3 * 3),
        "conv1_b": u(ks[1], (6,), 1 * 3 * 3),
        "conv2_w": u(ks[2], (16, 6, 3, 3), 6 * 3 * 3),
        "conv2_b": u(ks[3], (16,), 6 * 3 * 3),
        "fc1_w": u(ks[4], (120, 16 * 5 * 5), 16 * 5 * 5),
        "fc1_b": u(ks[5], (120,), 16 * 5 * 5),
        "fc2_w": u(ks[6], (84, 120), 120),
        "fc2_b": u(ks[7], (84,), 120),
        "fc3_w": u(ks[8], (10, 84), 84),
        "fc3_b": u(ks[9], (10,), 84),
    }


if __name__ == "__main__":
    key = jax.random.PRNGKey(0)
    pkey, xkey = jax.random.split(key)
    params = init_params(pkey)
    # Fashion-MNIST shaped input: batch=2, 1 channel, 28x28 (28x28 is required
    # so the flatten is 16*5*5 = 400 features).
    x = jax.random.normal(xkey, (2, 1, 28, 28), jnp.float32)

    fwd = jax.jit(make_fashion_mnist_forward(params, batch=2))
    out = jax.block_until_ready(fwd(x))
    assert out.shape == (2, 10) and out.dtype == jnp.float32

    ref = reference_forward(params, x)
    assert bool(jnp.allclose(out, ref, rtol=2e-2, atol=2e-2)), (
        "fused Pallas forward deviates from pure-JAX reference")
    print("KERNEL_OK")
</pallas_src>

<mosaic_0001>
module attributes {stable_mosaic.version = 11 : i64} {
  func.func @_fused_forward_kernel(%arg0: memref<64x28xf32, #tpu.memory_space<vmem>>, %arg1: memref<84x156xf32, #tpu.memory_space<vmem>>, %arg2: memref<1x156xf32, #tpu.memory_space<vmem>>, %arg3: memref<32x55xf32, #tpu.memory_space<vmem>>, %arg4: memref<150x78xf32, #tpu.memory_space<vmem>>, %arg5: memref<234x176xf32, #tpu.memory_space<vmem>>, %arg6: memref<1x176xf32, #tpu.memory_space<vmem>>, %arg7: memref<16x25xf32, #tpu.memory_space<vmem>>, %arg8: memref<160x80xf32, #tpu.memory_space<vmem>>, %arg9: memref<400x120xf32, #tpu.memory_space<vmem>>, %arg10: memref<1x120xf32, #tpu.memory_space<vmem>>, %arg11: memref<120x84xf32, #tpu.memory_space<vmem>>, %arg12: memref<1x84xf32, #tpu.memory_space<vmem>>, %arg13: memref<84x128xf32, #tpu.memory_space<vmem>>, %arg14: memref<1x128xf32, #tpu.memory_space<vmem>>, %arg15: memref<8x128xf32, #tpu.memory_space<vmem>>) attributes {dimension_semantics = [], scalar_prefetch = 0 : i64, scratch_operands = 0 : i64, tpu.core_type = #tpu.core_type<tc>} {
    %c0 = arith.constant 0 : index
    %c0_0 = arith.constant 0 : index
    %0 = vector.load %arg0[%c0, %c0_0] : memref<64x28xf32, #tpu.memory_space<vmem>>, vector<64x28xf32>
    %1 = vector.extract_strided_slice %0 {offsets = [0, 0], sizes = [56, 28], strides = [1, 1]} : vector<64x28xf32> to vector<56x28xf32>
    %2 = vector.extract_strided_slice %0 {offsets = [1, 0], sizes = [56, 28], strides = [1, 1]} : vector<64x28xf32> to vector<56x28xf32>
    %3 = vector.extract_strided_slice %0 {offsets = [2, 0], sizes = [56, 28], strides = [1, 1]} : vector<64x28xf32> to vector<56x28xf32>
    %4 = tpu.concatenate %1, %2, %3 in 1 : vector<56x28xf32>, vector<56x28xf32>, vector<56x28xf32> -> vector<56x84xf32>
    %c0_1 = arith.constant 0 : index
    %c0_2 = arith.constant 0 : index
    %5 = vector.load %arg1[%c0_1, %c0_2] : memref<84x156xf32, #tpu.memory_space<vmem>>, vector<84x156xf32>
    %cst = arith.constant dense<0.000000e+00> : vector<56x156xf32>
    %6 = tpu.matmul %4, %5, %cst {dimension_numbers = #tpu.dot_dimension_numbers<[1], [0], [0], [1], [0, 0, 1, 1], [], []>} : vector<56x84xf32>, vector<84x156xf32>, vector<56x156xf32> -> vector<56x156xf32>
    %c0_3 = arith.constant 0 : index
    %c0_4 = arith.constant 0 : index
    %7 = vector.load %arg2[%c0_3, %c0_4] : memref<1x156xf32, #tpu.memory_space<vmem>>, vector<1x156xf32>
    %8 = vector.broadcast %7 : vector<1x156xf32> to vector<56x156xf32>
    %9 = arith.addf %6, %8 : vector<56x156xf32>
    %cst_5 = arith.constant 0.000000e+00 : f32
    %10 = vector.broadcast %cst_5 : f32 to vector<56x156xf32>
    %11 = arith.maximumf %9, %10 : vector<56x156xf32>
    %12 = vector.extract_strided_slice %11 {offsets = [0, 0], sizes = [55, 156], strides = [1, 1]} : vector<56x156xf32> to vector<55x156xf32>
    %13 = vector.extract_strided_slice %11 {offsets = [1, 0], sizes = [55, 156], strides = [1, 1]} : vector<56x156xf32> to vector<55x156xf32>
    %14 = arith.maximumf %12, %13 : vector<55x156xf32>
    %15 = vector.extract_strided_slice %14 {offsets = [0, 0], sizes = [55, 150], strides = [1, 1]} : vector<55x156xf32> to vector<55x150xf32>
    %16 = vector.extract_strided_slice %14 {offsets = [0, 6], sizes = [55, 150], strides = [1, 1]} : vector<55x156xf32> to vector<55x150xf32>
    %17 = arith.maximumf %15, %16 : vector<55x150xf32>
    %c0_6 = arith.constant 0 : index
    %c0_7 = arith.constant 0 : index
    %18 = vector.load %arg3[%c0_6, %c0_7] : memref<32x55xf32, #tpu.memory_space<vmem>>, vector<32x55xf32>
    %cst_8 = arith.constant dense<0.000000e+00> : vector<32x150xf32>
    %19 = tpu.matmul %18, %17, %cst_8 {dimension_numbers = #tpu.dot_dimension_numbers<[1], [0], [0], [1], [0, 0, 1, 1], [], []>} : vector<32x55xf32>, vector<55x150xf32>, vector<32x150xf32> -> vector<32x150xf32>
    %c0_9 = arith.constant 0 : index
    %c0_10 = arith.constant 0 : index
    %20 = vector.load %arg4[%c0_9, %c0_10] : memref<150x78xf32, #tpu.memory_space<vmem>>, vector<150x78xf32>
    %cst_11 = arith.constant dense<0.000000e+00> : vector<32x78xf32>
    %21 = tpu.matmul %19, %20, %cst_11 {dimension_numbers = #tpu.dot_dimension_numbers<[1], [0], [0], [1], [0, 0, 1, 1], [], []>} : vector<32x150xf32>, vector<150x78xf32>, vector<32x78xf32> -> vector<32x78xf32>
    %22 = vector.extract_strided_slice %21 {offsets = [0, 0], sizes = [26, 78], strides = [1, 1]} : vector<32x78xf32> to vector<26x78xf32>
    %23 = vector.extract_strided_slice %21 {offsets = [1, 0], sizes = [26, 78], strides = [1, 1]} : vector<32x78xf32> to vector<26x78xf32>
    %24 = vector.extract_strided_slice %21 {offsets = [2, 0], sizes = [26, 78], strides = [1, 1]} : vector<32x78xf32> to vector<26x78xf32>
    %25 = tpu.concatenate %22, %23, %24 in 1 : vector<26x78xf32>, vector<26x78xf32>, vector<26x78xf32> -> vector<26x234xf32>
    %c0_12 = arith.constant 0 : index
    %c0_13 = arith.constant 0 : index
    %26 = vector.load %arg5[%c0_12, %c0_13] : memref<234x176xf32, #tpu.memory_space<vmem>>, vector<234x176xf32>
    %cst_14 = arith.constant dense<0.000000e+00> : vector<26x176xf32>
    %27 = tpu.matmul %25, %26, %cst_14 {dimension_numbers = #tpu.dot_dimension_numbers<[1], [0], [0], [1], [0, 0, 1, 1], [], []>} : vector<26x234xf32>, vector<234x176xf32>, vector<26x176xf32> -> vector<26x176xf32>
    %c0_15 = arith.constant 0 : index
    %c0_16 = arith.constant 0 : index
    %28 = vector.load %arg6[%c0_15, %c0_16] : memref<1x176xf32, #tpu.memory_space<vmem>>, vector<1x176xf32>
    %29 = vector.broadcast %28 : vector<1x176xf32> to vector<26x176xf32>
    %30 = arith.addf %27, %29 : vector<26x176xf32>
    %cst_17 = arith.constant 0.000000e+00 : f32
    %31 = vector.broadcast %cst_17 : f32 to vector<26x176xf32>
    %32 = arith.maximumf %30, %31 : vector<26x176xf32>
    %33 = vector.extract_strided_slice %32 {offsets = [0, 0], sizes = [25, 176], strides = [1, 1]} : vector<26x176xf32> to vector<25x176xf32>
    %34 = vector.extract_strided_slice %32 {offsets = [1, 0], sizes = [25, 176], strides = [1, 1]} : vector<26x176xf32> to vector<25x176xf32>
    %35 = arith.maximumf %33, %34 : vector<25x176xf32>
    %36 = vector.extract_strided_slice %35 {offsets = [0, 0], sizes = [25, 160], strides = [1, 1]} : vector<25x176xf32> to vector<25x160xf32>
    %37 = vector.extract_strided_slice %35 {offsets = [0, 16], sizes = [25, 160], strides = [1, 1]} : vector<25x176xf32> to vector<25x160xf32>
    %38 = arith.maximumf %36, %37 : vector<25x160xf32>
    %c0_18 = arith.constant 0 : index
    %c0_19 = arith.constant 0 : index
    %39 = vector.load %arg7[%c0_18, %c0_19] : memref<16x25xf32, #tpu.memory_space<vmem>>, vector<16x25xf32>
    %cst_20 = arith.constant dense<0.000000e+00> : vector<16x160xf32>
    %40 = tpu.matmul %39, %38, %cst_20 {dimension_numbers = #tpu.dot_dimension_numbers<[1], [0], [0], [1], [0, 0, 1, 1], [], []>} : vector<16x25xf32>, vector<25x160xf32>, vector<16x160xf32> -> vector<16x160xf32>
    %c0_21 = arith.constant 0 : index
    %c0_22 = arith.constant 0 : index
    %41 = vector.load %arg8[%c0_21, %c0_22] : memref<160x80xf32, #tpu.memory_space<vmem>>, vector<160x80xf32>
    %cst_23 = arith.constant dense<0.000000e+00> : vector<16x80xf32>
    %42 = tpu.matmul %40, %41, %cst_23 {dimension_numbers = #tpu.dot_dimension_numbers<[1], [0], [0], [1], [0, 0, 1, 1], [], []>} : vector<16x160xf32>, vector<160x80xf32>, vector<16x80xf32> -> vector<16x80xf32>
    %43 = vector.extract_strided_slice %42 {offsets = [0, 0], sizes = [8, 80], strides = [1, 1]} : vector<16x80xf32> to vector<8x80xf32>
    %44 = vector.extract_strided_slice %42 {offsets = [1, 0], sizes = [8, 80], strides = [1, 1]} : vector<16x80xf32> to vector<8x80xf32>
    %45 = vector.extract_strided_slice %42 {offsets = [2, 0], sizes = [8, 80], strides = [1, 1]} : vector<16x80xf32> to vector<8x80xf32>
    %46 = vector.extract_strided_slice %42 {offsets = [3, 0], sizes = [8, 80], strides = [1, 1]} : vector<16x80xf32> to vector<8x80xf32>
    %47 = vector.extract_strided_slice %42 {offsets = [4, 0], sizes = [8, 80], strides = [1, 1]} : vector<16x80xf32> to vector<8x80xf32>
    %48 = tpu.concatenate %43, %44, %45, %46, %47 in 1 : vector<8x80xf32>, vector<8x80xf32>, vector<8x80xf32>, vector<8x80xf32>, vector<8x80xf32> -> vector<8x400xf32>
    %c0_24 = arith.constant 0 : index
    %c0_25 = arith.constant 0 : index
    %49 = vector.load %arg9[%c0_24, %c0_25] : memref<400x120xf32, #tpu.memory_space<vmem>>, vector<400x120xf32>
    %cst_26 = arith.constant dense<0.000000e+00> : vector<8x120xf32>
    %50 = tpu.matmul %48, %49, %cst_26 {dimension_numbers = #tpu.dot_dimension_numbers<[1], [0], [0], [1], [0, 0, 1, 1], [], []>} : vector<8x400xf32>, vector<400x120xf32>, vector<8x120xf32> -> vector<8x120xf32>
    %c0_27 = arith.constant 0 : index
    %c0_28 = arith.constant 0 : index
    %51 = vector.load %arg10[%c0_27, %c0_28] : memref<1x120xf32, #tpu.memory_space<vmem>>, vector<1x120xf32>
    %52 = vector.broadcast %51 : vector<1x120xf32> to vector<8x120xf32>
    %53 = arith.addf %50, %52 : vector<8x120xf32>
    %cst_29 = arith.constant 0.000000e+00 : f32
    %54 = vector.broadcast %cst_29 : f32 to vector<8x120xf32>
    %55 = arith.maximumf %53, %54 : vector<8x120xf32>
    %c0_30 = arith.constant 0 : index
    %c0_31 = arith.constant 0 : index
    %56 = vector.load %arg11[%c0_30, %c0_31] : memref<120x84xf32, #tpu.memory_space<vmem>>, vector<120x84xf32>
    %cst_32 = arith.constant dense<0.000000e+00> : vector<8x84xf32>
    %57 = tpu.matmul %55, %56, %cst_32 {dimension_numbers = #tpu.dot_dimension_numbers<[1], [0], [0], [1], [0, 0, 1, 1], [], []>} : vector<8x120xf32>, vector<120x84xf32>, vector<8x84xf32> -> vector<8x84xf32>
    %c0_33 = arith.constant 0 : index
    %c0_34 = arith.constant 0 : index
    %58 = vector.load %arg12[%c0_33, %c0_34] : memref<1x84xf32, #tpu.memory_space<vmem>>, vector<1x84xf32>
    %59 = vector.broadcast %58 : vector<1x84xf32> to vector<8x84xf32>
    %60 = arith.addf %57, %59 : vector<8x84xf32>
    %cst_35 = arith.constant 0.000000e+00 : f32
    %61 = vector.broadcast %cst_35 : f32 to vector<8x84xf32>
    %62 = arith.maximumf %60, %61 : vector<8x84xf32>
    %c0_36 = arith.constant 0 : index
    %c0_37 = arith.constant 0 : index
    %63 = vector.load %arg13[%c0_36, %c0_37] : memref<84x128xf32, #tpu.memory_space<vmem>>, vector<84x128xf32>
    %cst_38 = arith.constant dense<0.000000e+00> : vector<8x128xf32>
    %64 = tpu.matmul %62, %63, %cst_38 {dimension_numbers = #tpu.dot_dimension_numbers<[1], [0], [0], [1], [0, 0, 1, 1], [], []>} : vector<8x84xf32>, vector<84x128xf32>, vector<8x128xf32> -> vector<8x128xf32>
    %c0_39 = arith.constant 0 : index
    %c0_40 = arith.constant 0 : index
    %65 = vector.load %arg14[%c0_39, %c0_40] : memref<1x128xf32, #tpu.memory_space<vmem>>, vector<1x128xf32>
    %66 = vector.broadcast %65 : vector<1x128xf32> to vector<8x128xf32>
    %67 = arith.addf %64, %66 : vector<8x128xf32>
    %c0_41 = arith.constant 0 : index
    %c0_42 = arith.constant 0 : index
    %68 = vector.load %arg15[%c0_41, %c0_42] : memref<8x128xf32, #tpu.memory_space<vmem>>, vector<8x128xf32>
    tpu.vector_store %arg15[%c0_41, %c0_42], %67 {strides = array<i32>} : memref<8x128xf32, #tpu.memory_space<vmem>>, vector<8x128xf32>,
    return
  }
}

</mosaic_0001>

<llo_original>
// kernel: forward.1
$region0: #{forward.1}
  #allocation0 [shape = 'u32[]', space=smem, size = 0x4, offset = 0x4, fixed_abs, tag = 'smem constant byte address 0x4 - core index']
  #allocation1 [shape = 'u32[144,128]{1,0:T(1,128)}', space=vmem, size = 0x12000, scoped, tag = 'internal scratch']
  %s0 = inlined_call_operand.vmem [shape: f32[64,28], index: 0, kind: input, shape index: {}]
  %s1 = inlined_call_operand.hbm [shape: f32[84,156], index: 1, kind: input, shape index: {}]
  %s2 = inlined_call_operand.vmem [shape: f32[1,156], index: 2, kind: input, shape index: {}]
  %s3 = inlined_call_operand.vmem [shape: f32[32,55], index: 3, kind: input, shape index: {}]
  %s4 = inlined_call_operand.hbm [shape: f32[150,78], index: 4, kind: input, shape index: {}]
  %s5 = inlined_call_operand.hbm [shape: f32[234,176], index: 5, kind: input, shape index: {}]
  %s6 = inlined_call_operand.vmem [shape: f32[1,176], index: 6, kind: input, shape index: {}]
  %s7 = inlined_call_operand.hbm [shape: f32[16,25], index: 7, kind: input, shape index: {}]
  %s8 = inlined_call_operand.hbm [shape: f32[160,80], index: 8, kind: input, shape index: {}]
  %s9 = inlined_call_operand.hbm [shape: f32[400,120], index: 9, kind: input, shape index: {}]
  %s10 = inlined_call_operand.vmem [shape: f32[1,120], index: 10, kind: input, shape index: {}]
  %s11 = inlined_call_operand.vmem [shape: f32[120,84], index: 11, kind: input, shape index: {}]
  %s12 = inlined_call_operand.vmem [shape: f32[1,84], index: 12, kind: input, shape index: {}]
  %s13 = inlined_call_operand.hbm [shape: f32[84,128], index: 13, kind: input, shape index: {}]
  %s14 = inlined_call_operand.vmem [shape: f32[1,128], index: 14, kind: input, shape index: {}]
  %s15 = inlined_call_operand.vmem [shape: f32[8,128], index: 15, kind: output, shape index: {}]
  %s16 = sld [smem:[#allocation0]]
  $region98: #{forward.1} parent=0
    _
  %s18 = ssub.s32 1, %s16
  %s19 = scalar_select 0, %s18, %s16
  $region1: #{forward.1} parent=0
    #allocation2 [shape = 'u8[90112]{0}', space=vmem, size = 0x16000, scoped, tag = 'input window, operand 1, single buffered']
    #allocation3 [shape = 's32[1]{0}', space=sflag, size = 0x4, scoped, tag = 'scoped memory for forward.1']
    #allocation4 [shape = 'u8[77824]{0}', space=vmem, size = 0x13000, scoped, tag = 'input window, operand 4, single buffered']
    #allocation5 [shape = 's32[1]{0}', space=sflag, size = 0x4, scoped, tag = 'scoped memory for forward.1']
    #allocation6 [shape = 'u8[245760]{0}', space=vmem, size = 0x3c000, scoped, tag = 'input window, operand 5, single buffered']
    #allocation7 [shape = 'u8[8192]{0}', space=vmem, size = 0x2000, scoped, tag = 'input window, operand 7, single buffered']
    #allocation8 [shape = 's32[1]{0}', space=sflag, size = 0x4, scoped, tag = 'scoped memory for forward.1']
    #allocation9 [shape = 'u8[81920]{0}', space=vmem, size = 0x14000, scoped, tag = 'input window, operand 8, single buffered']
    #allocation10 [shape = 'u8[204800]{0}', space=vmem, size = 0x32000, scoped, tag = 'input window, operand 9, single buffered']
    #allocation11 [shape = 's32[1]{0}', space=sflag, size = 0x4, scoped, tag = 'scoped memory for forward.1']
    #allocation12 [shape = 'u8[45056]{0}', space=vmem, size = 0xb000, scoped, tag = 'input window, operand 13, single buffered']
    %20 = vsyncpa [#allocation3], 0
    %21 = vsyncpa [#allocation5], 0
    %22 = vsyncpa [#allocation8], 0
    %23 = vsyncpa [#allocation11], 0
    // Predicated region
    $region2: #{forward.1} parent=1 // pred_check
      _
    $region3: #{forward.1} parent=1 // pred_check_branch
      %25 = sbr.rel (0) target = $region5
    $region4: #{forward.1} parent=1 // pred_region
      _
    $region5: #{forward.1} parent=1 // pred_fallthru
      _
    // Predicated region
    $region6: #{forward.1} parent=1 // pred_check
      _
    $region7: #{forward.1} parent=1 // pred_check_branch
      %27 = sbr.rel (0) target = $region9
    $region8: #{forward.1} parent=1 // pred_region
      %s29 = ssub.s32 2816, 2816
      %30 = vsyncadd [#allocation3], %s29
      %s31 = sshll.u32 [#allocation2], 4
      %s32 = int_to_ptr.vmem [resolvable:$true] %s31
      %37 = dma.hbm_to_vmem [thread:$0]  %s1, 2816, %s32, [#allocation3], 256, 256, 16
    $region9: #{forward.1} parent=1 // pred_fallthru
      _
    // Predicated region
    $region10: #{forward.1} parent=1 // pred_check
      _
    $region11: #{forward.1} parent=1 // pred_check_branch
      %39 = sbr.rel (0) target = $region13
    $region12: #{forward.1} parent=1 // pred_region
      _
    $region13: #{forward.1} parent=1 // pred_fallthru
      _
    // Predicated region
    $region14: #{forward.1} parent=1 // pred_check
      _
    $region15: #{forward.1} parent=1 // pred_check_branch
      %41 = sbr.rel (0) target = $region17
    $region16: #{forward.1} parent=1 // pred_region
      _
    $region17: #{forward.1} parent=1 // pred_fallthru
      _
    // Predicated region
    $region18: #{forward.1} parent=1 // pred_check
      _
    $region19: #{forward.1} parent=1 // pred_check_branch
      %43 = sbr.rel (0) target = $region21
    $region20: #{forward.1} parent=1 // pred_region
      %s45 = ssub.s32 2432, 2432
      %46 = vsyncadd [#allocation5], %s45
      %s47 = sshll.u32 [#allocation4], 4
      %s48 = int_to_ptr.vmem [resolvable:$true] %s47
      %53 = dma.hbm_to_vmem [thread:$0]  %s4, 2432, %s48, [#allocation5], 128, 128, 8
    $region21: #{forward.1} parent=1 // pred_fallthru
      _
    // Predicated region
    $region22: #{forward.1} parent=1 // pred_check
      _
    $region23: #{forward.1} parent=1 // pred_check_branch
      %55 = sbr.rel (0) target = $region25
    $region24: #{forward.1} parent=1 // pred_region
      %s57 = ssub.s32 7680, 7680
      %58 = vsyncadd [#allocation5], %s57
      %s59 = sshll.u32 [#allocation6], 4
      %s60 = int_to_ptr.vmem [resolvable:$true] %s59
      %65 = dma.hbm_to_vmem [thread:$0]  %s5, 7680, %s60, [#allocation5], 256, 256, 16
    $region25: #{forward.1} parent=1 // pred_fallthru
      _
    // Predicated region
    $region26: #{forward.1} parent=1 // pred_check
      _
    $region27: #{forward.1} parent=1 // pred_check_branch
      %67 = sbr.rel (0) target = $region29
    $region28: #{forward.1} parent=1 // pred_region
      _
    $region29: #{forward.1} parent=1 // pred_fallthru
      _
    // Predicated region
    $region30: #{forward.1} parent=1 // pred_check
      _
    $region31: #{forward.1} parent=1 // pred_check_branch
      %69 = sbr.rel (0) target = $region33
    $region32: #{forward.1} parent=1 // pred_region
      %s71 = ssub.s32 256, 256
      %72 = vsyncadd [#allocation8], %s71
      %s73 = sshll.u32 [#allocation7], 4
      %s74 = int_to_ptr.vmem [resolvable:$true] %s73
      %79 = dma.hbm_to_vmem [thread:$0]  %s7, 256, %s74, [#allocation8], 128, 128, 8
    $region33: #{forward.1} parent=1 // pred_fallthru
      _
    // Predicated region
    $region34: #{forward.1} parent=1 // pred_check
      _
    $region35: #{forward.1} parent=1 // pred_check_branch
      %81 = sbr.rel (0) target = $region37
    $region36: #{forward.1} parent=1 // pred_region
      %s83 = ssub.s32 2560, 2560
      %84 = vsyncadd [#allocation8], %s83
      %s85 = sshll.u32 [#allocation9], 4
      %s86 = int_to_ptr.vmem [resolvable:$true] %s85
      %91 = dma.hbm_to_vmem [thread:$0]  %s8, 2560, %s86, [#allocation8], 128, 128, 8
    $region37: #{forward.1} parent=1 // pred_fallthru
      _
    // Predicated region
    $region38: #{forward.1} parent=1 // pred_check
      _
    $region39: #{forward.1} parent=1 // pred_check_branch
      %93 = sbr.rel (0) target = $region41
    $region40: #{forward.1} parent=1 // pred_region
      %s95 = ssub.s32 6400, 6400
      %96 = vsyncadd [#allocation11], %s95
      %s97 = sshll.u32 [#allocation10], 4
      %s98 = int_to_ptr.vmem [resolvable:$true] %s97
      %103 = dma.hbm_to_vmem [thread:$0]  %s9, 6400, %s98, [#allocation11], 128, 128, 8
    $region41: #{forward.1} parent=1 // pred_fallthru
      _
    // Predicated region
    $region42: #{forward.1} parent=1 // pred_check
      _
    $region43: #{forward.1} parent=1 // pred_check_branch
      %105 = sbr.rel (0) target = $region45
    $region44: #{forward.1} parent=1 // pred_region
      _
    $region45: #{forward.1} parent=1 // pred_fallthru
      _
    // Predicated region
    $region46: #{forward.1} parent=1 // pred_check
      _
    $region47: #{forward.1} parent=1 // pred_check_branch
      %107 = sbr.rel (0) target = $region49
    $region48: #{forward.1} parent=1 // pred_region
      _
    $region49: #{forward.1} parent=1 // pred_fallthru
      _
    // Predicated region
    $region50: #{forward.1} parent=1 // pred_check
      _
    $region51: #{forward.1} parent=1 // pred_check_branch
      %109 = sbr.rel (0) target = $region53
    $region52: #{forward.1} parent=1 // pred_region
      _
    $region53: #{forward.1} parent=1 // pred_fallthru
      _
    // Predicated region
    $region54: #{forward.1} parent=1 // pred_check
      _
    $region55: #{forward.1} parent=1 // pred_check_branch
      %111 = sbr.rel (0) target = $region57
    $region56: #{forward.1} parent=1 // pred_region
      %s113 = ssub.s32 1408, 1408
      %114 = vsyncadd [#allocation11], %s113
      %s115 = sshll.u32 [#allocation12], 4
      %s116 = int_to_ptr.vmem [resolvable:$true] %s115
      %121 = dma.hbm_to_vmem [thread:$0]  %s13, 1408, %s116, [#allocation11], 128, 128, 8
    $region57: #{forward.1} parent=1 // pred_fallthru
      _
    // Predicated region
    $region58: #{forward.1} parent=1 // pred_check
      _
    $region59: #{forward.1} parent=1 // pred_check_branch
      %123 = sbr.rel (0) target = $region61
    $region60: #{forward.1} parent=1 // pred_region
      _
    $region61: #{forward.1} parent=1 // pred_fallthru
      _
    // Predicated region
    $region62: #{forward.1} parent=1 // pred_check
      _
    $region63: #{forward.1} parent=1 // pred_check_branch
      %125 = sbr.rel (0) target = $region65
    $region64: #{forward.1} parent=1 // pred_region
      %126 = dma.done [#allocation3], 2816
    $region65: #{forward.1} parent=1 // pred_fallthru
      _
    // Predicated region
    $region66: #{forward.1} parent=1 // pred_check
      _
    $region67: #{forward.1} parent=1 // pred_check_branch
      %128 = sbr.rel (0) target = $region69
    $region68: #{forward.1} parent=1 // pred_region
      %129 = dma.done [#allocation5], 2432
    $region69: #{forward.1} parent=1 // pred_fallthru
      _
    // Predicated region
    $region70: #{forward.1} parent=1 // pred_check
      _
    $region71: #{forward.1} parent=1 // pred_check_branch
      %131 = sbr.rel (0) target = $region73
    $region72: #{forward.1} parent=1 // pred_region
      %132 = dma.done [#allocation5], 7680
    $region73: #{forward.1} parent=1 // pred_fallthru
      _
    // Predicated region
    $region74: #{forward.1} parent=1 // pred_check
      _
    $region75: #{forward.1} parent=1 // pred_check_branch
      %134 = sbr.rel (0) target = $region77
    $region76: #{forward.1} parent=1 // pred_region
      %135 = dma.done [#allocation8], 256
    $region77: #{forward.1} parent=1 // pred_fallthru
      _
    // Predicated region
    $region78: #{forward.1} parent=1 // pred_check
      _
    $region79: #{forward.1} parent=1 // pred_check_branch
      %137 = sbr.rel (0) target = $region81
    $region80: #{forward.1} parent=1 // pred_region
      %138 = dma.done [#allocation8], 2560
    $region81: #{forward.1} parent=1 // pred_fallthru
      _
    // Predicated region
    $region82: #{forward.1} parent=1 // pred_check
      _
    $region83: #{forward.1} parent=1 // pred_check_branch
      %140 = sbr.rel (0) target = $region85
    $region84: #{forward.1} parent=1 // pred_region
      %141 = dma.done [#allocation11], 6400
    $region85: #{forward.1} parent=1 // pred_fallthru
      _
    // Predicated region
    $region86: #{forward.1} parent=1 // pred_check
      _
    $region87: #{forward.1} parent=1 // pred_check_branch
      %143 = sbr.rel (0) target = $region89
    $region88: #{forward.1} parent=1 // pred_region
      %144 = dma.done [#allocation11], 1408
    $region89: #{forward.1} parent=1 // pred_fallthru
      _
    %v145 = vld [vmem:[%s0] sm:$0xff]
    %v146 = vld [vmem:[%s0 + $0x8] sm:$0xff]
    %v147 = vld [vmem:[%s0 + $0x10] sm:$0xff]
    %v148 = vld [vmem:[%s0 + $0x18] sm:$0xff]
    %v149 = vld [vmem:[%s0 + $0x20] sm:$0xff]
    %v150 = vld [vmem:[%s0 + $0x28] sm:$0xff]
    %v151 = vld [vmem:[%s0 + $0x30] sm:$0xff]
    %v152 = vld [vmem:[%s0 + $0x38] sm:$0xff]
    %vm161 = vcmask 1046528
    %v162 = vrot.slane %v145, 1
    %v163 = vrot.slane %v146, 1
    %v164 = vsel %vm161, %v162, %v163
    %v165 = vrot.slane %v147, 1
    %v166 = vsel %vm161, %v163, %v165
    %v167 = vrot.slane %v148, 1
    %v168 = vsel %vm161, %v165, %v167
    %v169 = vrot.slane %v149, 1
    %v170 = vsel %vm161, %v167, %v169
    %v171 = vrot.slane %v150, 1
    %v172 = vsel %vm161, %v169, %v171
    %v173 = vrot.slane %v151, 1
    %v174 = vsel %vm161, %v171, %v173
    %v175 = vrot.slane %v152, 1
    %v176 = vsel %vm161, %v173, %v175
    %177 = vrot.lane.b32.xlu0 %v164, 28
    %v178 = vpop.permute.xlu0 %177
    %179 = vrot.lane.b32.xlu0 %v166, 28
    %v180 = vpop.permute.xlu0 %179
    %181 = vrot.lane.b32.xlu0 %v168, 28
    %v182 = vpop.permute.xlu0 %181
    %183 = vrot.lane.b32.xlu0 %v170, 28
    %v184 = vpop.permute.xlu0 %183
    %185 = vrot.lane.b32.xlu0 %v172, 28
    %v186 = vpop.permute.xlu0 %185
    %187 = vrot.lane.b32.xlu0 %v174, 28
    %v188 = vpop.permute.xlu0 %187
    %189 = vrot.lane.b32.xlu0 %v176, 28
    %v190 = vpop.permute.xlu0 %189
    %vm198 = vcmask 1045504
    %v199 = vrot.slane %v145, 2
    %v200 = vrot.slane %v146, 2
    %v201 = vsel %vm198, %v199, %v200
    %v202 = vrot.slane %v147, 2
    %v203 = vsel %vm198, %v200, %v202
    %v204 = vrot.slane %v148, 2
    %v205 = vsel %vm198, %v202, %v204
    %v206 = vrot.slane %v149, 2
    %v207 = vsel %vm198, %v204, %v206
    %v208 = vrot.slane %v150, 2
    %v209 = vsel %vm198, %v206, %v208
    %v210 = vrot.slane %v151, 2
    %v211 = vsel %vm198, %v208, %v210
    %v212 = vrot.slane %v152, 2
    %v213 = vsel %vm198, %v210, %v212
    %214 = vrot.lane.b32.xlu0 %v201, 56
    %v215 = vpop.permute.xlu0 %214
    %216 = vrot.lane.b32.xlu0 %v203, 56
    %v217 = vpop.permute.xlu0 %216
    %218 = vrot.lane.b32.xlu0 %v205, 56
    %v219 = vpop.permute.xlu0 %218
    %220 = vrot.lane.b32.xlu0 %v207, 56
    %v221 = vpop.permute.xlu0 %220
    %222 = vrot.lane.b32.xlu0 %v209, 56
    %v223 = vpop.permute.xlu0 %222
    %224 = vrot.lane.b32.xlu0 %v211, 56
    %v225 = vpop.permute.xlu0 %224
    %226 = vrot.lane.b32.xlu0 %v213, 56
    %v227 = vpop.permute.xlu0 %226
    %vm235 = vcmask 228352
    %v236 = vsel %vm235, %v145, %v178
    %v237 = vsel %vm235, %v146, %v180
    %v238 = vsel %vm235, %v147, %v182
    %v239 = vsel %vm235, %v148, %v184
    %v240 = vsel %vm235, %v149, %v186
    %v241 = vsel %vm235, %v150, %v188
    %v242 = vsel %vm235, %v151, %v190
    %vm243 = vcmask 457728
    %v244 = vsel %vm243, %v236, %v215
    %v245 = vsel %vm243, %v237, %v217
    %v246 = vsel %vm243, %v238, %v219
    %v247 = vsel %vm243, %v239, %v221
    %v248 = vsel %vm243, %v240, %v223
    %v249 = vsel %vm243, %v241, %v225
    %v250 = vsel %vm243, %v242, %v227
    %v251 = vld [vmem:[#allocation2] sm:$0xff]
    %v252 = vld [vmem:[#allocation2 + $0x8] sm:$0xff]
    %v253 = vld [vmem:[#allocation2 + $0x10] sm:$0xff]
    %v254 = vld [vmem:[#allocation2 + $0x18] sm:$0xff]
    %v255 = vld [vmem:[#allocation2 + $0x20] sm:$0xff]
    %v256 = vld [vmem:[#allocation2 + $0x28] sm:$0xff]
    %v257 = vld [vmem:[#allocation2 + $0x30] sm:$0xff]
    %v258 = vld [vmem:[#allocation2 + $0x38] sm:$0xff]
    %v259 = vld [vmem:[#allocation2 + $0x40] sm:$0xff]
    %v260 = vld [vmem:[#allocation2 + $0x48] sm:$0xff]
    %v261 = vld [vmem:[#allocation2 + $0x50] sm:$0xff]
    %v262 = vld [vmem:[#allocation2 + $0x58] sm:$0xff]
    %v263 = vld [vmem:[#allocation2 + $0x60] sm:$0xff]
    %v264 = vld [vmem:[#allocation2 + $0x68] sm:$0xff]
    %v265 = vld [vmem:[#allocation2 + $0x70] sm:$0xff]
    %v266 = vld [vmem:[#allocation2 + $0x78] sm:$0xff]
    %v267 = vld [vmem:[#allocation2 + $0x80] sm:$0xff]
    %v268 = vld [vmem:[#allocation2 + $0x88] sm:$0xff]
    %v269 = vld [vmem:[#allocation2 + $0x90] sm:$0xff]
    %v270 = vld [vmem:[#allocation2 + $0x98] sm:$0xff]
    %v271 = vld [vmem:[#allocation2 + $0xa0] sm:$0xf]
    %v272 = vld [vmem:[#allocation2 + $0xa8] sm:$0xf]
    %v273 = vld [vmem:[%s2] sm:$0x3]
    %v275 = vlaneseq
    %v276 = vshrl.u32 %v275, 7
    %v277 = vsub.s32 0, %v276
    %v278 = vrot.slane %v273, %v277
    %v279 = vlaneseq
    %v280 = vshrl.u32 %v279, 7
    %v281 = vsub.s32 1, %v280
    %v282 = vrot.slane %v273, %v281
    %vm285 = vcmask 687104
    %v287 = vsel %vm285, %v244, 0
    %v290 = vsel %vm285, %v245, 0
    %v293 = vsel %vm285, %v246, 0
    %v296 = vsel %vm285, %v247, 0
    %v299 = vsel %vm285, %v248, 0
    %v302 = vsel %vm285, %v249, 0
    %v305 = vsel %vm285, %v250, 0
    %vm307 = vcmask 1043456
    %v309 = vsel %vm307, %v271, 0
    %v312 = vsel %vm307, %v272, 0
    %314 = vmatprep.subr.mxu0 %v252
    %315 = vmatpush1.msra.mxu0 %v251
    %316 = vmatprep.subr.mxu0 %v254
    %317 = vmatpush1.msra.mxu0 %v253
    %318 = vmatprep.subr.mxu0 %v256
    %319 = vmatpush1.msra.mxu0 %v255
    %320 = vmatprep.subr.mxu0 %v258
    %321 = vmatpush1.msra.mxu0 %v257
    %322 = vmatprep.subr.mxu0 %v260
    %323 = vmatpush1.msra.mxu0 %v259
    %324 = vmatprep.subr.mxu0 %v262
    %325 = vmatpush1.msra.mxu0 %v261
    %326 = vmatprep.subr.mxu0 %v264
    %327 = vmatpush1.msra.mxu0 %v263
    %328 = vmatprep.subr.mxu0 %v266
    %329 = vmatpush1.msra.mxu0 %v265
    %330 = vmatprep.subr.mxu0 %v268
    %331 = vmatpush1.msra.mxu0 %v267
    %332 = vmatprep.subr.mxu0 %v270
    %333 = vmatpush1.msra.mxu0 %v269
    %334 = vmatprep.subr.mxu0 %v312
    %335 = vmatpush1.msra.mxu0 %v309
    %336 = vmatprep.subr.mxu0 0.0
    %337 = vmatpush1.msra.mxu0 0.0
    %338 = vmatprep.subr.mxu0 0.0
    %339 = vmatpush1.msra.mxu0 0.0
    %340 = vmatprep.subr.mxu0 0.0
    %341 = vmatpush1.msra.mxu0 0.0
    %342 = vmatprep.subr.mxu0 0.0
    %343 = vmatpush1.msra.mxu0 0.0
    %344 = vmatprep.subr.mxu0 0.0
    %345 = vmatpush1.msra.mxu0 0.0
    %346 = vmatprep.subr.mxu0 0.0
    %347 = vmatpush1.msra.mxu0 0.0
    %348 = vmatprep.subr.mxu0 0.0
    %349 = vmatpush1.msra.mxu0 0.0
    %350 = vmatprep.subr.mxu0 0.0
    %351 = vmatpush1.msra.mxu0 0.0
    %352 = vmatprep.subr.mxu0 0.0
    %353 = vmatpush1.msra.mxu0 0.0
    %354 = vmatprep.subr.mxu0 0.0
    %355 = vmatpush1.msra.mxu0 0.0
    %356 = vmatprep.subr.mxu0 0.0
    %357 = vmatpush1.msra.mxu0 0.0
    %358 = vmatprep.subr.mxu0 0.0
    %359 = vmatpush1.msra.mxu0 0.0
    %360 = vmatprep.subr.mxu0 0.0
    %361 = vmatpush1.msra.mxu0 0.0
    %362 = vmatprep.subr.mxu0 0.0
    %363 = vmatpush1.msra.mxu0 0.0
    %364 = vmatprep.subr.mxu0 0.0
    %365 = vmatpush1.msra.mxu0 0.0
    %366 = vmatprep.subr.mxu0 0.0
    %367 = vmatpush1.msra.mxu0 0.0
    %368 = vmatprep.subr.mxu0 0.0
    %369 = vmatpush1.msra.mxu0 0.0
    %370 = vmatprep.subr.mxu0 0.0
    %371 = vmatpush1.msra.mxu0 0.0
    %372 = vmatprep.subr.mxu0 0.0
    %373 = vmatpush1.msra.mxu0 0.0
    %374 = vmatprep.subr.mxu0 0.0
    %375 = vmatpush1.msra.mxu0 0.0
    %376 = vmatprep.subr.mxu0 0.0
    %377 = vmatpush1.msra.mxu0 0.0
    %378 = vmatprep.mubr.f32.mxu0 0.0
    %379 = vmatmul.mubr.f32.gmra.mrb[0].mxu0 %v287
    %v380 = vpop.f32.mrb[0].mxu0
    %v381 = vadd.f32 %v278, %v380
    %v382 = vpop.f32.mrb[0].mxu0
    %v383 = vadd.f32 %v282, %v382
    %384 = vmatprep.mubr.f32.mxu0 0.0
    %385 = vmatmul.mubr.f32.gmra.mrb[0].mxu0 %v290
    %v386 = vpop.f32.mrb[0].mxu0
    %v387 = vadd.f32 %v278, %v386
    %v388 = vpop.f32.mrb[0].mxu0
    %v389 = vadd.f32 %v282, %v388
    %390 = vmatprep.mubr.f32.mxu0 0.0
    %391 = vmatmul.mubr.f32.gmra.mrb[0].mxu0 %v293
    %v392 = vpop.f32.mrb[0].mxu0
    %v393 = vadd.f32 %v278, %v392
    %v394 = vpop.f32.mrb[0].mxu0
    %v395 = vadd.f32 %v282, %v394
    %396 = vmatprep.mubr.f32.mxu0 0.0
    %397 = vmatmul.mubr.f32.gmra.mrb[0].mxu0 %v296
    %v398 = vpop.f32.mrb[0].mxu0
    %v399 = vadd.f32 %v278, %v398
    %v400 = vpop.f32.mrb[0].mxu0
    %v401 = vadd.f32 %v282, %v400
    %402 = vmatprep.mubr.f32.mxu0 0.0
    %403 = vmatmul.mubr.f32.gmra.mrb[0].mxu0 %v299
    %v404 = vpop.f32.mrb[0].mxu0
    %v405 = vadd.f32 %v278, %v404
    %v406 = vpop.f32.mrb[0].mxu0
    %v407 = vadd.f32 %v282, %v406
    %408 = vmatprep.mubr.f32.mxu0 0.0
    %409 = vmatmul.mubr.f32.gmra.mrb[0].mxu0 %v302
    %v410 = vpop.f32.mrb[0].mxu0
    %v411 = vadd.f32 %v278, %v410
    %v412 = vpop.f32.mrb[0].mxu0
    %v413 = vadd.f32 %v282, %v412
    %414 = vmatprep.mubr.f32.mxu0 0.0
    %415 = vmatmul.mubr.f32.gmra.mrb[0].mxu0 %v305
    %v416 = vpop.f32.mrb[0].mxu0
    %v417 = vadd.f32 %v278, %v416
    %v418 = vpop.f32.mrb[0].mxu0
    %v419 = vadd.f32 %v282, %v418
    %420 = vdwg.mxu0
    %v421 = vmax.f32 %v381, 0.0
    %v422 = vmax.f32 %v383, 0.0
    %v423 = vmax.f32 %v387, 0.0
    %v424 = vmax.f32 %v389, 0.0
    %v425 = vmax.f32 %v393, 0.0
    %v426 = vmax.f32 %v395, 0.0
    %v427 = vmax.f32 %v399, 0.0
    %v428 = vmax.f32 %v401, 0.0
    %v429 = vmax.f32 %v405, 0.0
    %v430 = vmax.f32 %v407, 0.0
    %v431 = vmax.f32 %v411, 0.0
    %v432 = vmax.f32 %v413, 0.0
    %v433 = vmax.f32 %v417, 0.0
    %v434 = vmax.f32 %v419, 0.0
    %v449 = vrot.slane %v421, 1
    %v450 = vrot.slane %v423, 1
    %v451 = vsel %vm161, %v449, %v450
    %v452 = vrot.slane %v422, 1
    %v453 = vrot.slane %v424, 1
    %v454 = vsel %vm161, %v452, %v453
    %v455 = vrot.slane %v425, 1
    %v456 = vsel %vm161, %v450, %v455
    %v457 = vrot.slane %v426, 1
    %v458 = vsel %vm161, %v453, %v457
    %v459 = vrot.slane %v427, 1
    %v460 = vsel %vm161, %v455, %v459
    %v461 = vrot.slane %v428, 1
    %v462 = vsel %vm161, %v457, %v461
    %v463 = vrot.slane %v429, 1
    %v464 = vsel %vm161, %v459, %v463
    %v465 = vrot.slane %v430, 1
    %v466 = vsel %vm161, %v461, %v465
    %v467 = vrot.slane %v431, 1
    %v468 = vsel %vm161, %v463, %v467
    %v469 = vrot.slane %v432, 1
    %v470 = vsel %vm161, %v465, %v469
    %v471 = vrot.slane %v433, 1
    %v472 = vsel %vm161, %v467, %v471
    %v473 = vrot.slane %v434, 1
    %v474 = vsel %vm161, %v469, %v473
    %v489 = vmax.f32 %v421, %v451
    %v490 = vmax.f32 %v422, %v454
    %v491 = vmax.f32 %v423, %v456
    %v492 = vmax.f32 %v424, %v458
    %v493 = vmax.f32 %v425, %v460
    %v494 = vmax.f32 %v426, %v462
    %v495 = vmax.f32 %v427, %v464
    %v496 = vmax.f32 %v428, %v466
    %v497 = vmax.f32 %v429, %v468
    %v498 = vmax.f32 %v430, %v470
    %v499 = vmax.f32 %v431, %v472
    %v500 = vmax.f32 %v432, %v474
    %v501 = vmax.f32 %v433, %v471
    %v502 = vmax.f32 %v434, %v473
    %517 = vrot.lane.b32.xlu0 %v489, 122
    %v518 = vpop.permute.xlu0 %517
    %519 = vrot.lane.b32.xlu0 %v490, 122
    %v520 = vpop.permute.xlu0 %519
    %521 = vrot.lane.b32.xlu0 %v491, 122
    %v522 = vpop.permute.xlu0 %521
    %523 = vrot.lane.b32.xlu0 %v492, 122
    %v524 = vpop.permute.xlu0 %523
    %525 = vrot.lane.b32.xlu0 %v493, 122
    %v526 = vpop.permute.xlu0 %525
    %527 = vrot.lane.b32.xlu0 %v494, 122
    %v528 = vpop.permute.xlu0 %527
    %529 = vrot.lane.b32.xlu0 %v495, 122
    %v530 = vpop.permute.xlu0 %529
    %531 = vrot.lane.b32.xlu0 %v496, 122
    %v532 = vpop.permute.xlu0 %531
    %533 = vrot.lane.b32.xlu0 %v497, 122
    %v534 = vpop.permute.xlu0 %533
    %535 = vrot.lane.b32.xlu0 %v498, 122
    %v536 = vpop.permute.xlu0 %535
    %537 = vrot.lane.b32.xlu0 %v499, 122
    %v538 = vpop.permute.xlu0 %537
    %539 = vrot.lane.b32.xlu0 %v500, 122
    %v540 = vpop.permute.xlu0 %539
    %541 = vrot.lane.b32.xlu0 %v501, 122
    %v542 = vpop.permute.xlu0 %541
    %543 = vrot.lane.b32.xlu0 %v502, 122
    %v544 = vpop.permute.xlu0 %543
    %vm545 = vcmask 998400
    %v546 = vsel %vm545, %v518, %v520
    %v547 = vsel %vm545, %v522, %v524
    %v548 = vsel %vm545, %v526, %v528
    %v549 = vsel %vm545, %v530, %v532
    %v550 = vsel %vm545, %v534, %v536
    %v551 = vsel %vm545, %v538, %v540
    %v552 = vsel %vm545, %v542, %v544
    %v567 = vmax.f32 %v489, %v546
    %v568 = vmax.f32 %v490, %v520
    %v569 = vmax.f32 %v491, %v547
    %v570 = vmax.f32 %v492, %v524
    %v571 = vmax.f32 %v493, %v548
    %v572 = vmax.f32 %v494, %v528
    %v573 = vmax.f32 %v495, %v549
    %v574 = vmax.f32 %v496, %v532
    %v575 = vmax.f32 %v497, %v550
    %v576 = vmax.f32 %v498, %v536
    %v577 = vmax.f32 %v499, %v551
    %v578 = vmax.f32 %v500, %v540
    %v579 = vmax.f32 %v501, %v552
    %v580 = vmax.f32 %v502, %v544
    %v581 = vld [vmem:[%s3] sm:$0xff]
    %v582 = vld [vmem:[%s3 + $0x8] sm:$0xff]
    %v583 = vld [vmem:[%s3 + $0x10] sm:$0xff]
    %v584 = vld [vmem:[%s3 + $0x18] sm:$0xff]
    %vm585 = vcmask 449536
    %v587 = vsel %vm585, %v581, 0
    %v590 = vsel %vm585, %v582, 0
    %v593 = vsel %vm585, %v583, 0
    %v596 = vsel %vm585, %v584, 0
    %v599 = vsel %vm161, %v579, 0
    %v602 = vsel %vm161, %v580, 0
    %604 = vmatprep.subr.mxu0 %v568
    %605 = vmatpush1.msra.mxu0 %v567
    %606 = vmatprep.subr.mxu0 %v570
    %607 = vmatpush1.msra.mxu0 %v569
    %608 = vmatprep.subr.mxu0 %v572
    %609 = vmatpush1.msra.mxu0 %v571
    %610 = vmatprep.subr.mxu0 %v574
    %611 = vmatpush1.msra.mxu0 %v573
    %612 = vmatprep.subr.mxu0 %v576
    %613 = vmatpush1.msra.mxu0 %v575
    %614 = vmatprep.subr.mxu0 %v578
    %615 = vmatpush1.msra.mxu0 %v577
    %616 = vmatprep.subr.mxu0 %v602
    %617 = vmatpush1.msra.mxu0 %v599
    %618 = vmatprep.subr.mxu0 0.0
    %619 = vmatpush1.msra.mxu0 0.0
    %620 = vmatprep.subr.mxu0 0.0
    %621 = vmatpush1.msra.mxu0 0.0
    %622 = vmatprep.subr.mxu0 0.0
    %623 = vmatpush1.msra.mxu0 0.0
    %624 = vmatprep.subr.mxu0 0.0
    %625 = vmatpush1.msra.mxu0 0.0
    %626 = vmatprep.subr.mxu0 0.0
    %627 = vmatpush1.msra.mxu0 0.0
    %628 = vmatprep.subr.mxu0 0.0
    %629 = vmatpush1.msra.mxu0 0.0
    %630 = vmatprep.subr.mxu0 0.0
    %631 = vmatpush1.msra.mxu0 0.0
    %632 = vmatprep.subr.mxu0 0.0
    %633 = vmatpush1.msra.mxu0 0.0
    %634 = vmatprep.subr.mxu0 0.0
    %635 = vmatpush1.msra.mxu0 0.0
    %636 = vmatprep.subr.mxu0 0.0
    %637 = vmatpush1.msra.mxu0 0.0
    %638 = vmatprep.subr.mxu0 0.0
    %639 = vmatpush1.msra.mxu0 0.0
    %640 = vmatprep.subr.mxu0 0.0
    %641 = vmatpush1.msra.mxu0 0.0
    %642 = vmatprep.subr.mxu0 0.0
    %643 = vmatpush1.msra.mxu0 0.0
    %644 = vmatprep.subr.mxu0 0.0
    %645 = vmatpush1.msra.mxu0 0.0
    %646 = vmatprep.subr.mxu0 0.0
    %647 = vmatpush1.msra.mxu0 0.0
    %648 = vmatprep.subr.mxu0 0.0
    %649 = vmatpush1.msra.mxu0 0.0
    %650 = vmatprep.subr.mxu0 0.0
    %651 = vmatpush1.msra.mxu0 0.0
    %652 = vmatprep.subr.mxu0 0.0
    %653 = vmatpush1.msra.mxu0 0.0
    %654 = vmatprep.subr.mxu0 0.0
    %655 = vmatpush1.msra.mxu0 0.0
    %656 = vmatprep.subr.mxu0 0.0
    %657 = vmatpush1.msra.mxu0 0.0
    %658 = vmatprep.subr.mxu0 0.0
    %659 = vmatpush1.msra.mxu0 0.0
    %660 = vmatprep.subr.mxu0 0.0
    %661 = vmatpush1.msra.mxu0 0.0
    %662 = vmatprep.subr.mxu0 0.0
    %663 = vmatpush1.msra.mxu0 0.0
    %664 = vmatprep.subr.mxu0 0.0
    %665 = vmatpush1.msra.mxu0 0.0
    %666 = vmatprep.subr.mxu0 0.0
    %667 = vmatpush1.msra.mxu0 0.0
    %668 = vmatprep.mubr.f32.mxu0 0.0
    %669 = vmatmul.mubr.f32.gmra.mrb[0].mxu0 %v587
    %v670 = vpop.f32.mrb[0].mxu0
    %v671 = vadd.f32 0.0, %v670
    %v672 = vpop.f32.mrb[0].mxu0
    %v673 = vadd.f32 0.0, %v672
    %674 = vmatprep.mubr.f32.mxu0 0.0
    %675 = vmatmul.mubr.f32.gmra.mrb[0].mxu0 %v590
    %v676 = vpop.f32.mrb[0].mxu0
    %v677 = vadd.f32 0.0, %v676
    %v678 = vpop.f32.mrb[0].mxu0
    %v679 = vadd.f32 0.0, %v678
    %680 = vmatprep.mubr.f32.mxu0 0.0
    %681 = vmatmul.mubr.f32.gmra.mrb[0].mxu0 %v593
    %v682 = vpop.f32.mrb[0].mxu0
    %v683 = vadd.f32 0.0, %v682
    %v684 = vpop.f32.mrb[0].mxu0
    %v685 = vadd.f32 0.0, %v684
    %686 = vmatprep.mubr.f32.mxu0 0.0
    %687 = vmatmul.mubr.f32.gmra.mrb[0].mxu0 %v596
    %v688 = vpop.f32.mrb[0].mxu0
    %v689 = vadd.f32 0.0, %v688
    %v690 = vpop.f32.mrb[0].mxu0
    %v691 = vadd.f32 0.0, %v690
    %692 = vdwg.mxu0
    %v693 = vld [vmem:[#allocation4] sm:$0xff]
    %v694 = vld [vmem:[#allocation4 + $0x8] sm:$0xff]
    %v695 = vld [vmem:[#allocation4 + $0x10] sm:$0xff]
    %v696 = vld [vmem:[#allocation4 + $0x18] sm:$0xff]
    %v697 = vld [vmem:[#allocation4 + $0x20] sm:$0xff]
    %v698 = vld [vmem:[#allocation4 + $0x28] sm:$0xff]
    %v699 = vld [vmem:[#allocation4 + $0x30] sm:$0xff]
    %v700 = vld [vmem:[#allocation4 + $0x38] sm:$0xff]
    %v701 = vld [vmem:[#allocation4 + $0x40] sm:$0xff]
    %v702 = vld [vmem:[#allocation4 + $0x48] sm:$0xff]
    %v703 = vld [vmem:[#allocation4 + $0x50] sm:$0xff]
    %v704 = vld [vmem:[#allocation4 + $0x58] sm:$0xff]
    %v705 = vld [vmem:[#allocation4 + $0x60] sm:$0xff]
    %v706 = vld [vmem:[#allocation4 + $0x68] sm:$0xff]
    %v707 = vld [vmem:[#allocation4 + $0x70] sm:$0xff]
    %v708 = vld [vmem:[#allocation4 + $0x78] sm:$0xff]
    %v709 = vld [vmem:[#allocation4 + $0x80] sm:$0xff]
    %v710 = vld [vmem:[#allocation4 + $0x88] sm:$0xff]
    %v711 = vld [vmem:[#allocation4 + $0x90] sm:$0x3f]
    %vm712 = vcmask 179200
    %v714 = vsel %vm712, %v673, 0
    %v717 = vsel %vm712, %v679, 0
    %v720 = vsel %vm712, %v685, 0
    %v723 = vsel %vm712, %v691, 0
    %v726 = vsel %vm198, %v711, 0
    %728 = vmatprep.subr.mxu0 0.0
    %729 = vmatpush1.msra.mxu0 %v693
    %730 = vmatprep.subr.mxu0 0.0
    %731 = vmatpush1.msra.mxu0 %v694
    %732 = vmatprep.subr.mxu0 0.0
    %733 = vmatpush1.msra.mxu0 %v695
    %734 = vmatprep.subr.mxu0 0.0
    %735 = vmatpush1.msra.mxu0 %v696
    %736 = vmatprep.subr.mxu0 0.0
    %737 = vmatpush1.msra.mxu0 %v697
    %738 = vmatprep.subr.mxu0 0.0
    %739 = vmatpush1.msra.mxu0 %v698
    %740 = vmatprep.subr.mxu0 0.0
    %741 = vmatpush1.msra.mxu0 %v699
    %742 = vmatprep.subr.mxu0 0.0
    %743 = vmatpush1.msra.mxu0 %v700
    %744 = vmatprep.subr.mxu0 0.0
    %745 = vmatpush1.msra.mxu0 %v701
    %746 = vmatprep.subr.mxu0 0.0
    %747 = vmatpush1.msra.mxu0 %v702
    %748 = vmatprep.subr.mxu0 0.0
    %749 = vmatpush1.msra.mxu0 %v703
    %750 = vmatprep.subr.mxu0 0.0
    %751 = vmatpush1.msra.mxu0 %v704
    %752 = vmatprep.subr.mxu0 0.0
    %753 = vmatpush1.msra.mxu0 %v705
    %754 = vmatprep.subr.mxu0 0.0
    %755 = vmatpush1.msra.mxu0 %v706
    %756 = vmatprep.subr.mxu0 0.0
    %757 = vmatpush1.msra.mxu0 %v707
    %758 = vmatprep.subr.mxu0 0.0
    %759 = vmatpush1.msra.mxu0 %v708
    %760 = vmatprep.subr.mxu0 0.0
    %761 = vmatpush1.msra.mxu0 %v709
    %762 = vmatprep.subr.mxu0 0.0
    %763 = vmatpush1.msra.mxu0 %v710
    %764 = vmatprep.subr.mxu0 0.0
    %765 = vmatpush1.msra.mxu0 %v726
    %766 = vmatprep.subr.mxu0 0.0
    %767 = vmatpush1.msra.mxu0 0.0
    %768 = vmatprep.subr.mxu0 0.0
    %769 = vmatpush1.msra.mxu0 0.0
    %770 = vmatprep.subr.mxu0 0.0
    %771 = vmatpush1.msra.mxu0 0.0
    %772 = vmatprep.subr.mxu0 0.0
    %773 = vmatpush1.msra.mxu0 0.0
    %774 = vmatprep.subr.mxu0 0.0
    %775 = vmatpush1.msra.mxu0 0.0
    %776 = vmatprep.subr.mxu0 0.0
    %777 = vmatpush1.msra.mxu0 0.0
    %778 = vmatprep.subr.mxu0 0.0
    %779 = vmatpush1.msra.mxu0 0.0
    %780 = vmatprep.subr.mxu0 0.0
    %781 = vmatpush1.msra.mxu0 0.0
    %782 = vmatprep.subr.mxu0 0.0
    %783 = vmatpush1.msra.mxu0 0.0
    %784 = vmatprep.subr.mxu0 0.0
    %785 = vmatpush1.msra.mxu0 0.0
    %786 = vmatprep.subr.mxu0 0.0
    %787 = vmatpush1.msra.mxu0 0.0
    %788 = vmatprep.subr.mxu0 0.0
    %789 = vmatpush1.msra.mxu0 0.0
    %790 = vmatprep.subr.mxu0 0.0
    %791 = vmatpush1.msra.mxu0 0.0
    %792 = vmatprep.mubr.f32.mxu0 %v714
    %793 = vmatmul.mubr.f32.gmra.mrb[0].mxu0 %v671
    %v794 = vpop.f32.mrb[0].mxu0
    %v795 = vadd.f32 0.0, %v794
    %v796 = vpop.f32.mrb[0].mxu0
    %797 = vmatprep.mubr.f32.mxu0 %v717
    %798 = vmatmul.mubr.f32.gmra.mrb[0].mxu0 %v677
    %v799 = vpop.f32.mrb[0].mxu0
    %v800 = vadd.f32 0.0, %v799
    %v801 = vpop.f32.mrb[0].mxu0
    %802 = vmatprep.mubr.f32.mxu0 %v720
    %803 = vmatmul.mubr.f32.gmra.mrb[0].mxu0 %v683
    %v804 = vpop.f32.mrb[0].mxu0
    %v805 = vadd.f32 0.0, %v804
    %v806 = vpop.f32.mrb[0].mxu0
    %807 = vmatprep.mubr.f32.mxu0 %v723
    %808 = vmatmul.mubr.f32.gmra.mrb[0].mxu0 %v689
    %v809 = vpop.f32.mrb[0].mxu0
    %v810 = vadd.f32 0.0, %v809
    %v811 = vpop.f32.mrb[0].mxu0
    %812 = vdwg.mxu0
    %v817 = vrot.slane %v795, 1
    %v818 = vrot.slane %v800, 1
    %v819 = vsel %vm161, %v817, %v818
    %v820 = vrot.slane %v805, 1
    %v821 = vsel %vm161, %v818, %v820
    %v822 = vrot.slane %v810, 1
    %v823 = vsel %vm161, %v820, %v822
    %824 = vrot.lane.b32.xlu0 %v819, 78
    %v825 = vpop.permute.xlu0 %824
    %826 = vrot.lane.b32.xlu0 %v821, 78
    %v827 = vpop.permute.xlu0 %826
    %828 = vrot.lane.b32.xlu0 %v823, 78
    %v829 = vpop.permute.xlu0 %828
    %830 = vrot.lane.b32.xlu0 %v822, 78
    %v831 = vpop.permute.xlu0 %830
    %v836 = vrot.slane %v795, 2
    %v837 = vrot.slane %v800, 2
    %v838 = vsel %vm198, %v836, %v837
    %v839 = vrot.slane %v805, 2
    %v840 = vsel %vm198, %v837, %v839
    %v841 = vrot.slane %v810, 2
    %v842 = vsel %vm198, %v839, %v841
    %843 = vrot.lane.b32.xlu0 %v838, 28
    %v844 = vpop.permute.xlu0 %843
    %845 = vrot.lane.b32.xlu0 %v840, 28
    %v846 = vpop.permute.xlu0 %845
    %847 = vrot.lane.b32.xlu0 %v842, 28
    %v848 = vpop.permute.xlu0 %847
    %849 = vrot.lane.b32.xlu0 %v841, 28
    %v850 = vpop.permute.xlu0 %849
    %vm855 = vcmask 637952
    %v856 = vsel %vm855, %v795, %v825
    %v857 = vsel %vm855, %v800, %v827
    %v858 = vsel %vm855, %v805, %v829
    %v859 = vsel %vm855, %v810, %v831
    %v860 = vsel %vm235, %v825, %v844
    %v861 = vsel %vm235, %v827, %v846
    %v862 = vsel %vm235, %v829, %v848
    %v863 = vsel %vm235, %v831, %v850
    %v864 = vld [vmem:[#allocation6] sm:$0xff]
    %v865 = vld [vmem:[#allocation6 + $0x8] sm:$0xff]
    %v866 = vld [vmem:[#allocation6 + $0x10] sm:$0xff]
    %v867 = vld [vmem:[#allocation6 + $0x18] sm:$0xff]
    %v868 = vld [vmem:[#allocation6 + $0x20] sm:$0xff]
    %v869 = vld [vmem:[#allocation6 + $0x28] sm:$0xff]
    %v870 = vld [vmem:[#allocation6 + $0x30] sm:$0xff]
    %v871 = vld [vmem:[#allocation6 + $0x38] sm:$0xff]
    %v872 = vld [vmem:[#allocation6 + $0x40] sm:$0xff]
    %v873 = vld [vmem:[#allocation6 + $0x48] sm:$0xff]
    %v874 = vld [vmem:[#allocation6 + $0x50] sm:$0xff]
    %v875 = vld [vmem:[#allocation6 + $0x58] sm:$0xff]
    %v876 = vld [vmem:[#allocation6 + $0x60] sm:$0xff]
    %v877 = vld [vmem:[#allocation6 + $0x68] sm:$0xff]
    %v878 = vld [vmem:[#allocation6 + $0x70] sm:$0xff]
    %v879 = vld [vmem:[#allocation6 + $0x78] sm:$0xff]
    %v880 = vld [vmem:[#allocation6 + $0x80] sm:$0xff]
    %v881 = vld [vmem:[#allocation6 + $0x88] sm:$0xff]
    %v882 = vld [vmem:[#allocation6 + $0x90] sm:$0xff]
    %v883 = vld [vmem:[#allocation6 + $0x98] sm:$0xff]
    %v884 = vld [vmem:[#allocation6 + $0xa0] sm:$0xff]
    %v885 = vld [vmem:[#allocation6 + $0xa8] sm:$0xff]
    %v886 = vld [vmem:[#allocation6 + $0xb0] sm:$0xff]
    %v887 = vld [vmem:[#allocation6 + $0xb8] sm:$0xff]
    %v888 = vld [vmem:[#allocation6 + $0xc0] sm:$0xff]
    %v889 = vld [vmem:[#allocation6 + $0xc8] sm:$0xff]
    %v890 = vld [vmem:[#allocation6 + $0xd0] sm:$0xff]
    %v891 = vld [vmem:[#allocation6 + $0xd8] sm:$0xff]
    %v892 = vld [vmem:[#allocation6 + $0xe0] sm:$0xff]
    %v893 = vld [vmem:[#allocation6 + $0xe8] sm:$0xff]
    %v894 = vld [vmem:[#allocation6 + $0xf0] sm:$0xff]
    %v895 = vld [vmem:[#allocation6 + $0xf8] sm:$0xff]
    %v896 = vld [vmem:[#allocation6 + $0x100] sm:$0xff]
    %v897 = vld [vmem:[#allocation6 + $0x108] sm:$0xff]
    %v898 = vld [vmem:[#allocation6 + $0x110] sm:$0xff]
    %v899 = vld [vmem:[#allocation6 + $0x118] sm:$0xff]
    %v900 = vld [vmem:[#allocation6 + $0x120] sm:$0xff]
    %v901 = vld [vmem:[#allocation6 + $0x128] sm:$0xff]
    %v902 = vld [vmem:[#allocation6 + $0x130] sm:$0xff]
    %v903 = vld [vmem:[#allocation6 + $0x138] sm:$0xff]
    %v904 = vld [vmem:[#allocation6 + $0x140] sm:$0xff]
    %v905 = vld [vmem:[#allocation6 + $0x148] sm:$0xff]
    %v906 = vld [vmem:[#allocation6 + $0x150] sm:$0xff]
    %v907 = vld [vmem:[#allocation6 + $0x158] sm:$0xff]
    %v908 = vld [vmem:[#allocation6 + $0x160] sm:$0xff]
    %v909 = vld [vmem:[#allocation6 + $0x168] sm:$0xff]
    %v910 = vld [vmem:[#allocation6 + $0x170] sm:$0xff]
    %v911 = vld [vmem:[#allocation6 + $0x178] sm:$0xff]
    %v912 = vld [vmem:[#allocation6 + $0x180] sm:$0xff]
    %v913 = vld [vmem:[#allocation6 + $0x188] sm:$0xff]
    %v914 = vld [vmem:[#allocation6 + $0x190] sm:$0xff]
    %v915 = vld [vmem:[#allocation6 + $0x198] sm:$0xff]
    %v916 = vld [vmem:[#allocation6 + $0x1a0] sm:$0xff]
    %v917 = vld [vmem:[#allocation6 + $0x1a8] sm:$0xff]
    %v918 = vld [vmem:[#allocation6 + $0x1b0] sm:$0xff]
    %v919 = vld [vmem:[#allocation6 + $0x1b8] sm:$0xff]
    %v920 = vld [vmem:[#allocation6 + $0x1c0] sm:$0xff]
    %v921 = vld [vmem:[#allocation6 + $0x1c8] sm:$0xff]
    %v922 = vld [vmem:[#allocation6 + $0x1d0] sm:$0x3]
    %v923 = vld [vmem:[#allocation6 + $0x1d8] sm:$0x3]
    %v924 = vld [vmem:[%s6] sm:$0x3]
    %v926 = vlaneseq
    %v927 = vshrl.u32 %v926, 7
    %v928 = vsub.s32 0, %v927
    %v929 = vrot.slane %v924, %v928
    %v930 = vlaneseq
    %v931 = vshrl.u32 %v930, 7
    %v932 = vsub.s32 1, %v931
    %v933 = vrot.slane %v924, %v932
    %vm936 = vcmask 867328
    %v938 = vsel %vm936, %v860, 0
    %v941 = vsel %vm936, %v861, 0
    %v944 = vsel %vm936, %v862, 0
    %v947 = vsel %vm936, %v863, 0
    %vm949 = vcmask 1041408
    %v951 = vsel %vm949, %v922, 0
    %v954 = vsel %vm949, %v923, 0
    %956 = vmatprep.subr.mxu0 %v865
    %957 = vmatpush1.msra.mxu0 %v864
    %958 = vmatprep.subr.mxu0 %v867
    %959 = vmatpush1.msra.mxu0 %v866
    %960 = vmatprep.subr.mxu0 %v869
    %961 = vmatpush1.msra.mxu0 %v868
    %962 = vmatprep.subr.mxu0 %v871
    %963 = vmatpush1.msra.mxu0 %v870
    %964 = vmatprep.subr.mxu0 %v873
    %965 = vmatpush1.msra.mxu0 %v872
    %966 = vmatprep.subr.mxu0 %v875
    %967 = vmatpush1.msra.mxu0 %v874
    %968 = vmatprep.subr.mxu0 %v877
    %969 = vmatpush1.msra.mxu0 %v876
    %970 = vmatprep.subr.mxu0 %v879
    %971 = vmatpush1.msra.mxu0 %v878
    %972 = vmatprep.subr.mxu0 %v881
    %973 = vmatpush1.msra.mxu0 %v880
    %974 = vmatprep.subr.mxu0 %v883
    %975 = vmatpush1.msra.mxu0 %v882
    %976 = vmatprep.subr.mxu0 %v885
    %977 = vmatpush1.msra.mxu0 %v884
    %978 = vmatprep.subr.mxu0 %v887
    %979 = vmatpush1.msra.mxu0 %v886
    %980 = vmatprep.subr.mxu0 %v889
    %981 = vmatpush1.msra.mxu0 %v888
    %982 = vmatprep.subr.mxu0 %v891
    %983 = vmatpush1.msra.mxu0 %v890
    %984 = vmatprep.subr.mxu0 %v893
    %985 = vmatpush1.msra.mxu0 %v892
    %986 = vmatprep.subr.mxu0 %v895
    %987 = vmatpush1.msra.mxu0 %v894
    %988 = vmatprep.subr.mxu0 %v897
    %989 = vmatpush1.msra.mxu0 %v896
    %990 = vmatprep.subr.mxu0 %v899
    %991 = vmatpush1.msra.mxu0 %v898
    %992 = vmatprep.subr.mxu0 %v901
    %993 = vmatpush1.msra.mxu0 %v900
    %994 = vmatprep.subr.mxu0 %v903
    %995 = vmatpush1.msra.mxu0 %v902
    %996 = vmatprep.subr.mxu0 %v905
    %997 = vmatpush1.msra.mxu0 %v904
    %998 = vmatprep.subr.mxu0 %v907
    %999 = vmatpush1.msra.mxu0 %v906
    %1000 = vmatprep.subr.mxu0 %v909
    %1001 = vmatpush1.msra.mxu0 %v908
    %1002 = vmatprep.subr.mxu0 %v911
    %1003 = vmatpush1.msra.mxu0 %v910
    %1004 = vmatprep.subr.mxu0 %v913
    %1005 = vmatpush1.msra.mxu0 %v912
    %1006 = vmatprep.subr.mxu0 %v915
    %1007 = vmatpush1.msra.mxu0 %v914
    %1008 = vmatprep.subr.mxu0 %v917
    %1009 = vmatpush1.msra.mxu0 %v916
    %1010 = vmatprep.subr.mxu0 %v919
    %1011 = vmatpush1.msra.mxu0 %v918
    %1012 = vmatprep.subr.mxu0 %v921
    %1013 = vmatpush1.msra.mxu0 %v920
    %1014 = vmatprep.subr.mxu0 %v954
    %1015 = vmatpush1.msra.mxu0 %v951
    %1016 = vmatprep.subr.mxu0 0.0
    %1017 = vmatpush1.msra.mxu0 0.0
    %1018 = vmatprep.subr.mxu0 0.0
    %1019 = vmatpush1.msra.mxu0 0.0
    %1020 = vmatprep.mubr.f32.mxu0 %v938
    %1021 = vmatmul.mubr.f32.gmra.mrb[0].mxu0 %v856
    %v1022 = vpop.f32.mrb[0].mxu0
    %v1023 = vadd.f32 %v929, %v1022
    %v1024 = vpop.f32.mrb[0].mxu0
    %v1025 = vadd.f32 %v933, %v1024
    %1026 = vmatprep.mubr.f32.mxu0 %v941
    %1027 = vmatmul.mubr.f32.gmra.mrb[0].mxu0 %v857
    %v1028 = vpop.f32.mrb[0].mxu0
    %v1029 = vadd.f32 %v929, %v1028
    %v1030 = vpop.f32.mrb[0].mxu0
    %v1031 = vadd.f32 %v933, %v1030
    %1032 = vmatprep.mubr.f32.mxu0 %v944
    %1033 = vmatmul.mubr.f32.gmra.mrb[0].mxu0 %v858
    %v1034 = vpop.f32.mrb[0].mxu0
    %v1035 = vadd.f32 %v929, %v1034
    %v1036 = vpop.f32.mrb[0].mxu0
    %v1037 = vadd.f32 %v933, %v1036
    %1038 = vmatprep.mubr.f32.mxu0 %v947
    %1039 = vmatmul.mubr.f32.gmra.mrb[0].mxu0 %v859
    %v1040 = vpop.f32.mrb[0].mxu0
    %v1041 = vadd.f32 %v929, %v1040
    %v1042 = vpop.f32.mrb[0].mxu0
    %v1043 = vadd.f32 %v933, %v1042
    %1044 = vdwg.mxu0
    %v1045 = vmax.f32 %v1023, 0.0
    %v1046 = vmax.f32 %v1025, 0.0
    %v1047 = vmax.f32 %v1029, 0.0
    %v1048 = vmax.f32 %v1031, 0.0
    %v1049 = vmax.f32 %v1035, 0.0
    %v1050 = vmax.f32 %v1037, 0.0
    %v1051 = vmax.f32 %v1041, 0.0
    %v1052 = vmax.f32 %v1043, 0.0
    %v1061 = vrot.slane %v1045, 1
    %v1062 = vrot.slane %v1047, 1
    %v1063 = vsel %vm161, %v1061, %v1062
    %v1064 = vrot.slane %v1046, 1
    %v1065 = vrot.slane %v1048, 1
    %v1066 = vsel %vm161, %v1064, %v1065
    %v1067 = vrot.slane %v1049, 1
    %v1068 = vsel %vm161, %v1062, %v1067
    %v1069 = vrot.slane %v1050, 1
    %v1070 = vsel %vm161, %v1065, %v1069
    %v1071 = vrot.slane %v1051, 1
    %v1072 = vsel %vm161, %v1067, %v1071
    %v1073 = vrot.slane %v1052, 1
    %v1074 = vsel %vm161, %v1069, %v1073
    %v1083 = vmax.f32 %v1045, %v1063
    %v1084 = vmax.f32 %v1046, %v1066
    %v1085 = vmax.f32 %v1047, %v1068
    %v1086 = vmax.f32 %v1048, %v1070
    %v1087 = vmax.f32 %v1049, %v1072
    %v1088 = vmax.f32 %v1050, %v1074
    %v1089 = vmax.f32 %v1051, %v1071
    %v1090 = vmax.f32 %v1052, %v1073
    %1099 = vrot.lane.b32.xlu0 %v1083, 112
    %v1100 = vpop.permute.xlu0 %1099
    %1101 = vrot.lane.b32.xlu0 %v1084, 112
    %v1102 = vpop.permute.xlu0 %1101
    %1103 = vrot.lane.b32.xlu0 %v1085, 112
    %v1104 = vpop.permute.xlu0 %1103
    %1105 = vrot.lane.b32.xlu0 %v1086, 112
    %v1106 = vpop.permute.xlu0 %1105
    %1107 = vrot.lane.b32.xlu0 %v1087, 112
    %v1108 = vpop.permute.xlu0 %1107
    %1109 = vrot.lane.b32.xlu0 %v1088, 112
    %v1110 = vpop.permute.xlu0 %1109
    %1111 = vrot.lane.b32.xlu0 %v1089, 112
    %v1112 = vpop.permute.xlu0 %1111
    %1113 = vrot.lane.b32.xlu0 %v1090, 112
    %v1114 = vpop.permute.xlu0 %1113
    %vm1115 = vcmask 916480
    %v1116 = vsel %vm1115, %v1100, %v1102
    %v1117 = vsel %vm1115, %v1104, %v1106
    %v1118 = vsel %vm1115, %v1108, %v1110
    %v1119 = vsel %vm1115, %v1112, %v1114
    %v1128 = vmax.f32 %v1083, %v1116
    %v1129 = vmax.f32 %v1084, %v1102
    %v1130 = vmax.f32 %v1085, %v1117
    %v1131 = vmax.f32 %v1086, %v1106
    %v1132 = vmax.f32 %v1087, %v1118
    %v1133 = vmax.f32 %v1088, %v1110
    %v1134 = vmax.f32 %v1089, %v1119
    %v1135 = vmax.f32 %v1090, %v1114
    %v1136 = vld [vmem:[#allocation7] sm:$0xff]
    %v1137 = vld [vmem:[#allocation7 + $0x8] sm:$0xff]
    %vm1138 = vcmask 203776
    %v1140 = vsel %vm1138, %v1136, 0
    %v1143 = vsel %vm1138, %v1137, 0
    %vm1145 = vcmask 1040384
    %v1147 = vsel %vm1145, %v1134, 0
    %v1150 = vsel %vm1145, %v1135, 0
    %1152 = vmatprep.subr.mxu0 %v1129
    %1153 = vmatpush1.msra.mxu0 %v1128
    %1154 = vmatprep.subr.mxu0 %v1131
    %1155 = vmatpush1.msra.mxu0 %v1130
    %1156 = vmatprep.subr.mxu0 %v1133
    %1157 = vmatpush1.msra.mxu0 %v1132
    %1158 = vmatprep.subr.mxu0 %v1150
    %1159 = vmatpush1.msra.mxu0 %v1147
    %1160 = vmatprep.subr.mxu0 0.0
    %1161 = vmatpush1.msra.mxu0 0.0
    %1162 = vmatprep.subr.mxu0 0.0
    %1163 = vmatpush1.msra.mxu0 0.0
    %1164 = vmatprep.subr.mxu0 0.0
    %1165 = vmatpush1.msra.mxu0 0.0
    %1166 = vmatprep.subr.mxu0 0.0
    %1167 = vmatpush1.msra.mxu0 0.0
    %1168 = vmatprep.subr.mxu0 0.0
    %1169 = vmatpush1.msra.mxu0 0.0
    %1170 = vmatprep.subr.mxu0 0.0
    %1171 = vmatpush1.msra.mxu0 0.0
    %1172 = vmatprep.subr.mxu0 0.0
    %1173 = vmatpush1.msra.mxu0 0.0
    %1174 = vmatprep.subr.mxu0 0.0
    %1175 = vmatpush1.msra.mxu0 0.0
    %1176 = vmatprep.subr.mxu0 0.0
    %1177 = vmatpush1.msra.mxu0 0.0
    %1178 = vmatprep.subr.mxu0 0.0
    %1179 = vmatpush1.msra.mxu0 0.0
    %1180 = vmatprep.subr.mxu0 0.0
    %1181 = vmatpush1.msra.mxu0 0.0
    %1182 = vmatprep.subr.mxu0 0.0
    %1183 = vmatpush1.msra.mxu0 0.0
    %1184 = vmatprep.subr.mxu0 0.0
    %1185 = vmatpush1.msra.mxu0 0.0
    %1186 = vmatprep.subr.mxu0 0.0
    %1187 = vmatpush1.msra.mxu0 0.0
    %1188 = vmatprep.subr.mxu0 0.0
    %1189 = vmatpush1.msra.mxu0 0.0
    %1190 = vmatprep.subr.mxu0 0.0
    %1191 = vmatpush1.msra.mxu0 0.0
    %1192 = vmatprep.subr.mxu0 0.0
    %1193 = vmatpush1.msra.mxu0 0.0
    %1194 = vmatprep.subr.mxu0 0.0
    %1195 = vmatpush1.msra.mxu0 0.0
    %1196 = vmatprep.subr.mxu0 0.0
    %1197 = vmatpush1.msra.mxu0 0.0
    %1198 = vmatprep.subr.mxu0 0.0
    %1199 = vmatpush1.msra.mxu0 0.0
    %1200 = vmatprep.subr.mxu0 0.0
    %1201 = vmatpush1.msra.mxu0 0.0
    %1202 = vmatprep.subr.mxu0 0.0
    %1203 = vmatpush1.msra.mxu0 0.0
    %1204 = vmatprep.subr.mxu0 0.0
    %1205 = vmatpush1.msra.mxu0 0.0
    %1206 = vmatprep.subr.mxu0 0.0
    %1207 = vmatpush1.msra.mxu0 0.0
    %1208 = vmatprep.subr.mxu0 0.0
    %1209 = vmatpush1.msra.mxu0 0.0
    %1210 = vmatprep.subr.mxu0 0.0
    %1211 = vmatpush1.msra.mxu0 0.0
    %1212 = vmatprep.subr.mxu0 0.0
    %1213 = vmatpush1.msra.mxu0 0.0
    %1214 = vmatprep.subr.mxu0 0.0
    %1215 = vmatpush1.msra.mxu0 0.0
    %1216 = vmatprep.mubr.f32.mxu0 0.0
    %1217 = vmatmul.mubr.f32.gmra.mrb[0].mxu0 %v1140
    %v1218 = vpop.f32.mrb[0].mxu0
    %v1219 = vadd.f32 0.0, %v1218
    %v1220 = vpop.f32.mrb[0].mxu0
    %v1221 = vadd.f32 0.0, %v1220
    %1222 = vmatprep.mubr.f32.mxu0 0.0
    %1223 = vmatmul.mubr.f32.gmra.mrb[0].mxu0 %v1143
    %v1224 = vpop.f32.mrb[0].mxu0
    %v1225 = vadd.f32 0.0, %v1224
    %v1226 = vpop.f32.mrb[0].mxu0
    %v1227 = vadd.f32 0.0, %v1226
    %1228 = vdwg.mxu0
    %v1229 = vld [vmem:[#allocation9] sm:$0xff]
    %v1230 = vld [vmem:[#allocation9 + $0x8] sm:$0xff]
    %v1231 = vld [vmem:[#allocation9 + $0x10] sm:$0xff]
    %v1232 = vld [vmem:[#allocation9 + $0x18] sm:$0xff]
    %v1233 = vld [vmem:[#allocation9 + $0x20] sm:$0xff]
    %v1234 = vld [vmem:[#allocation9 + $0x28] sm:$0xff]
    %v1235 = vld [vmem:[#allocation9 + $0x30] sm:$0xff]
    %v1236 = vld [vmem:[#allocation9 + $0x38] sm:$0xff]
    %v1237 = vld [vmem:[#allocation9 + $0x40] sm:$0xff]
    %v1238 = vld [vmem:[#allocation9 + $0x48] sm:$0xff]
    %v1239 = vld [vmem:[#allocation9 + $0x50] sm:$0xff]
    %v1240 = vld [vmem:[#allocation9 + $0x58] sm:$0xff]
    %v1241 = vld [vmem:[#allocation9 + $0x60] sm:$0xff]
    %v1242 = vld [vmem:[#allocation9 + $0x68] sm:$0xff]
    %v1243 = vld [vmem:[#allocation9 + $0x70] sm:$0xff]
    %v1244 = vld [vmem:[#allocation9 + $0x78] sm:$0xff]
    %v1245 = vld [vmem:[#allocation9 + $0x80] sm:$0xff]
    %v1246 = vld [vmem:[#allocation9 + $0x88] sm:$0xff]
    %v1247 = vld [vmem:[#allocation9 + $0x90] sm:$0xff]
    %v1248 = vld [vmem:[#allocation9 + $0x98] sm:$0xff]
    %vm1249 = vcmask 261120
    %v1251 = vsel %vm1249, %v1221, 0
    %v1254 = vsel %vm1249, %v1227, 0
    %1256 = vmatprep.subr.mxu0 0.0
    %1257 = vmatpush1.msra.mxu0 %v1229
    %1258 = vmatprep.subr.mxu0 0.0
    %1259 = vmatpush1.msra.mxu0 %v1230
    %1260 = vmatprep.subr.mxu0 0.0
    %1261 = vmatpush1.msra.mxu0 %v1231
    %1262 = vmatprep.subr.mxu0 0.0
    %1263 = vmatpush1.msra.mxu0 %v1232
    %1264 = vmatprep.subr.mxu0 0.0
    %1265 = vmatpush1.msra.mxu0 %v1233
    %1266 = vmatprep.subr.mxu0 0.0
    %1267 = vmatpush1.msra.mxu0 %v1234
    %1268 = vmatprep.subr.mxu0 0.0
    %1269 = vmatpush1.msra.mxu0 %v1235
    %1270 = vmatprep.subr.mxu0 0.0
    %1271 = vmatpush1.msra.mxu0 %v1236
    %1272 = vmatprep.subr.mxu0 0.0
    %1273 = vmatpush1.msra.mxu0 %v1237
    %1274 = vmatprep.subr.mxu0 0.0
    %1275 = vmatpush1.msra.mxu0 %v1238
    %1276 = vmatprep.subr.mxu0 0.0
    %1277 = vmatpush1.msra.mxu0 %v1239
    %1278 = vmatprep.subr.mxu0 0.0
    %1279 = vmatpush1.msra.mxu0 %v1240
    %1280 = vmatprep.subr.mxu0 0.0
    %1281 = vmatpush1.msra.mxu0 %v1241
    %1282 = vmatprep.subr.mxu0 0.0
    %1283 = vmatpush1.msra.mxu0 %v1242
    %1284 = vmatprep.subr.mxu0 0.0
    %1285 = vmatpush1.msra.mxu0 %v1243
    %1286 = vmatprep.subr.mxu0 0.0
    %1287 = vmatpush1.msra.mxu0 %v1244
    %1288 = vmatprep.subr.mxu0 0.0
    %1289 = vmatpush1.msra.mxu0 %v1245
    %1290 = vmatprep.subr.mxu0 0.0
    %1291 = vmatpush1.msra.mxu0 %v1246
    %1292 = vmatprep.subr.mxu0 0.0
    %1293 = vmatpush1.msra.mxu0 %v1247
    %1294 = vmatprep.subr.mxu0 0.0
    %1295 = vmatpush1.msra.mxu0 %v1248
    %1296 = vmatprep.subr.mxu0 0.0
    %1297 = vmatpush1.msra.mxu0 0.0
    %1298 = vmatprep.subr.mxu0 0.0
    %1299 = vmatpush1.msra.mxu0 0.0
    %1300 = vmatprep.subr.mxu0 0.0
    %1301 = vmatpush1.msra.mxu0 0.0
    %1302 = vmatprep.subr.mxu0 0.0
    %1303 = vmatpush1.msra.mxu0 0.0
    %1304 = vmatprep.subr.mxu0 0.0
    %1305 = vmatpush1.msra.mxu0 0.0
    %1306 = vmatprep.subr.mxu0 0.0
    %1307 = vmatpush1.msra.mxu0 0.0
    %1308 = vmatprep.subr.mxu0 0.0
    %1309 = vmatpush1.msra.mxu0 0.0
    %1310 = vmatprep.subr.mxu0 0.0
    %1311 = vmatpush1.msra.mxu0 0.0
    %1312 = vmatprep.subr.mxu0 0.0
    %1313 = vmatpush1.msra.mxu0 0.0
    %1314 = vmatprep.subr.mxu0 0.0
    %1315 = vmatpush1.msra.mxu0 0.0
    %1316 = vmatprep.subr.mxu0 0.0
    %1317 = vmatpush1.msra.mxu0 0.0
    %1318 = vmatprep.subr.mxu0 0.0
    %1319 = vmatpush1.msra.mxu0 0.0
    %1320 = vmatprep.mubr.f32.mxu0 %v1251
    %1321 = vmatmul.mubr.f32.gmra.mrb[0].mxu0 %v1219
    %v1322 = vpop.f32.mrb[0].mxu0
    %v1323 = vadd.f32 0.0, %v1322
    %v1324 = vpop.f32.mrb[0].mxu0
    %1325 = vmatprep.mubr.f32.mxu0 %v1254
    %1326 = vmatmul.mubr.f32.gmra.mrb[0].mxu0 %v1225
    %v1327 = vpop.f32.mrb[0].mxu0
    %v1328 = vadd.f32 0.0, %v1327
    %v1329 = vpop.f32.mrb[0].mxu0
    %1330 = vdwg.mxu0
    %v1333 = vrot.slane %v1323, 1
    %v1334 = vrot.slane %v1328, 1
    %v1335 = vsel %vm161, %v1333, %v1334
    %1336 = vrot.lane.b32.xlu0 %v1335, 80
    %v1337 = vpop.permute.xlu0 %1336
    %v1339 = vrot.slane %v1323, 2
    %v1340 = vrot.slane %v1328, 2
    %v1341 = vsel %vm198, %v1339, %v1340
    %1342 = vrot.lane.b32.xlu0 %v1341, 32
    %v1343 = vpop.permute.xlu0 %1342
    %vm1345 = vcmask 1044480
    %v1346 = vrot.slane %v1323, 3
    %v1347 = vrot.slane %v1328, 3
    %v1348 = vsel %vm1345, %v1346, %v1347
    %1349 = vrot.lane.b32.xlu0 %v1348, 112
    %v1350 = vpop.permute.xlu0 %1349
    %v1352 = vrot.slane %v1323, 4
    %v1353 = vrot.slane %v1328, 4
    %v1354 = vsel %vm307, %v1352, %v1353
    %1355 = vrot.lane.b32.xlu0 %v1354, 64
    %v1356 = vpop.permute.xlu0 %1355
    %vm1358 = vcmask 654336
    %v1359 = vsel %vm1358, %v1323, %v1337
    %v1360 = vsel %vm1249, %v1337, %v1343
    %v1361 = vsel %vm1115, %v1360, %v1350
    %vm1362 = vcmask 523264
    %v1363 = vsel %vm1362, %v1350, %v1356
    %v1364 = vld [vmem:[#allocation10] sm:$0xff]
    %v1365 = vld [vmem:[#allocation10 + $0x8] sm:$0xff]
    %v1366 = vld [vmem:[#allocation10 + $0x10] sm:$0xff]
    %v1367 = vld [vmem:[#allocation10 + $0x18] sm:$0xff]
    %v1368 = vld [vmem:[#allocation10 + $0x20] sm:$0xff]
    %v1369 = vld [vmem:[#allocation10 + $0x28] sm:$0xff]
    %v1370 = vld [vmem:[#allocation10 + $0x30] sm:$0xff]
    %v1371 = vld [vmem:[#allocation10 + $0x38] sm:$0xff]
    %v1372 = vld [vmem:[#allocation10 + $0x40] sm:$0xff]
    %v1373 = vld [vmem:[#allocation10 + $0x48] sm:$0xff]
    %v1374 = vld [vmem:[#allocation10 + $0x50] sm:$0xff]
    %v1375 = vld [vmem:[#allocation10 + $0x58] sm:$0xff]
    %v1376 = vld [vmem:[#allocation10 + $0x60] sm:$0xff]
    %v1377 = vld [vmem:[#allocation10 + $0x68] sm:$0xff]
    %v1378 = vld [vmem:[#allocation10 + $0x70] sm:$0xff]
    %v1379 = vld [vmem:[#allocation10 + $0x78] sm:$0xff]
    %v1380 = vld [vmem:[#allocation10 + $0x80] sm:$0xff]
    %v1381 = vld [vmem:[#allocation10 + $0x88] sm:$0xff]
    %v1382 = vld [vmem:[#allocation10 + $0x90] sm:$0xff]
    %v1383 = vld [vmem:[#allocation10 + $0x98] sm:$0xff]
    %v1384 = vld [vmem:[#allocation10 + $0xa0] sm:$0xff]
    %v1385 = vld [vmem:[#allocation10 + $0xa8] sm:$0xff]
    %v1386 = vld [vmem:[#allocation10 + $0xb0] sm:$0xff]
    %v1387 = vld [vmem:[#allocation10 + $0xb8] sm:$0xff]
    %v1388 = vld [vmem:[#allocation10 + $0xc0] sm:$0xff]
    %v1389 = vld [vmem:[#allocation10 + $0xc8] sm:$0xff]
    %v1390 = vld [vmem:[#allocation10 + $0xd0] sm:$0xff]
    %v1391 = vld [vmem:[#allocation10 + $0xd8] sm:$0xff]
    %v1392 = vld [vmem:[#allocation10 + $0xe0] sm:$0xff]
    %v1393 = vld [vmem:[#allocation10 + $0xe8] sm:$0xff]
    %v1394 = vld [vmem:[#allocation10 + $0xf0] sm:$0xff]
    %v1395 = vld [vmem:[#allocation10 + $0xf8] sm:$0xff]
    %v1396 = vld [vmem:[#allocation10 + $0x100] sm:$0xff]
    %v1397 = vld [vmem:[#allocation10 + $0x108] sm:$0xff]
    %v1398 = vld [vmem:[#allocation10 + $0x110] sm:$0xff]
    %v1399 = vld [vmem:[#allocation10 + $0x118] sm:$0xff]
    %v1400 = vld [vmem:[#allocation10 + $0x120] sm:$0xff]
    %v1401 = vld [vmem:[#allocation10 + $0x128] sm:$0xff]
    %v1402 = vld [vmem:[#allocation10 + $0x130] sm:$0xff]
    %v1403 = vld [vmem:[#allocation10 + $0x138] sm:$0xff]
    %v1404 = vld [vmem:[#allocation10 + $0x140] sm:$0xff]
    %v1405 = vld [vmem:[#allocation10 + $0x148] sm:$0xff]
    %v1406 = vld [vmem:[#allocation10 + $0x150] sm:$0xff]
    %v1407 = vld [vmem:[#allocation10 + $0x158] sm:$0xff]
    %v1408 = vld [vmem:[#allocation10 + $0x160] sm:$0xff]
    %v1409 = vld [vmem:[#allocation10 + $0x168] sm:$0xff]
    %v1410 = vld [vmem:[#allocation10 + $0x170] sm:$0xff]
    %v1411 = vld [vmem:[#allocation10 + $0x178] sm:$0xff]
    %v1412 = vld [vmem:[#allocation10 + $0x180] sm:$0xff]
    %v1413 = vld [vmem:[#allocation10 + $0x188] sm:$0xff]
    %v1414 = vld [vmem:[%s10] sm:$0x1]
    %v1416 = vlaneseq
    %v1417 = vshrl.u32 %v1416, 7
    %v1418 = vsub.s32 0, %v1417
    %v1419 = vrot.slane %v1414, %v1418
    %vm1421 = vcmask 130048
    %v1422 = vsel %vm1421, %v1356, 0
    %1424 = vmatprep.subr.mxu0 0.0
    %1425 = vmatpush1.msra.mxu0 %v1364
    %1426 = vmatprep.subr.mxu0 0.0
    %1427 = vmatpush1.msra.mxu0 %v1365
    %1428 = vmatprep.subr.mxu0 0.0
    %1429 = vmatpush1.msra.mxu0 %v1366
    %1430 = vmatprep.subr.mxu0 0.0
    %1431 = vmatpush1.msra.mxu0 %v1367
    %1432 = vmatprep.subr.mxu0 0.0
    %1433 = vmatpush1.msra.mxu0 %v1368
    %1434 = vmatprep.subr.mxu0 0.0
    %1435 = vmatpush1.msra.mxu0 %v1369
    %1436 = vmatprep.subr.mxu0 0.0
    %1437 = vmatpush1.msra.mxu0 %v1370
    %1438 = vmatprep.subr.mxu0 0.0
    %1439 = vmatpush1.msra.mxu0 %v1371
    %1440 = vmatprep.subr.mxu0 0.0
    %1441 = vmatpush1.msra.mxu0 %v1372
    %1442 = vmatprep.subr.mxu0 0.0
    %1443 = vmatpush1.msra.mxu0 %v1373
    %1444 = vmatprep.subr.mxu0 0.0
    %1445 = vmatpush1.msra.mxu0 %v1374
    %1446 = vmatprep.subr.mxu0 0.0
    %1447 = vmatpush1.msra.mxu0 %v1375
    %1448 = vmatprep.subr.mxu0 0.0
    %1449 = vmatpush1.msra.mxu0 %v1376
    %1450 = vmatprep.subr.mxu0 0.0
    %1451 = vmatpush1.msra.mxu0 %v1377
    %1452 = vmatprep.subr.mxu0 0.0
    %1453 = vmatpush1.msra.mxu0 %v1378
    %1454 = vmatprep.subr.mxu0 0.0
    %1455 = vmatpush1.msra.mxu0 %v1379
    %1456 = vmatprep.subr.mxu0 0.0
    %1457 = vmatpush1.msra.mxu0 %v1380
    %1458 = vmatprep.subr.mxu0 0.0
    %1459 = vmatpush1.msra.mxu0 %v1381
    %1460 = vmatprep.subr.mxu0 0.0
    %1461 = vmatpush1.msra.mxu0 %v1382
    %1462 = vmatprep.subr.mxu0 0.0
    %1463 = vmatpush1.msra.mxu0 %v1383
    %1464 = vmatprep.subr.mxu0 0.0
    %1465 = vmatpush1.msra.mxu0 %v1384
    %1466 = vmatprep.subr.mxu0 0.0
    %1467 = vmatpush1.msra.mxu0 %v1385
    %1468 = vmatprep.subr.mxu0 0.0
    %1469 = vmatpush1.msra.mxu0 %v1386
    %1470 = vmatprep.subr.mxu0 0.0
    %1471 = vmatpush1.msra.mxu0 %v1387
    %1472 = vmatprep.subr.mxu0 0.0
    %1473 = vmatpush1.msra.mxu0 %v1388
    %1474 = vmatprep.subr.mxu0 0.0
    %1475 = vmatpush1.msra.mxu0 %v1389
    %1476 = vmatprep.subr.mxu0 0.0
    %1477 = vmatpush1.msra.mxu0 %v1390
    %1478 = vmatprep.subr.mxu0 0.0
    %1479 = vmatpush1.msra.mxu0 %v1391
    %1480 = vmatprep.subr.mxu0 0.0
    %1481 = vmatpush1.msra.mxu0 %v1392
    %1482 = vmatprep.subr.mxu0 0.0
    %1483 = vmatpush1.msra.mxu0 %v1393
    %1484 = vmatprep.subr.mxu0 0.0
    %1485 = vmatpush1.msra.mxu0 %v1394
    %1486 = vmatprep.subr.mxu0 0.0
    %1487 = vmatpush1.msra.mxu0 %v1395
    %1488 = vmatprep.mubr.f32.mxu0 %v1361
    %1489 = vmatmul.mubr.f32.gmra.mrb[0].mxu0 %v1359
    %v1490 = vpop.f32.mrb[0].mxu0
    %v1491 = vadd.f32 %v1419, %v1490
    %v1492 = vpop.f32.mrb[0].mxu0
    %1493 = vdwg.mxu0
    %1494 = vmatprep.subr.mxu0 0.0
    %1495 = vmatpush1.msra.mxu0 %v1396
    %1496 = vmatprep.subr.mxu0 0.0
    %1497 = vmatpush1.msra.mxu0 %v1397
    %1498 = vmatprep.subr.mxu0 0.0
    %1499 = vmatpush1.msra.mxu0 %v1398
    %1500 = vmatprep.subr.mxu0 0.0
    %1501 = vmatpush1.msra.mxu0 %v1399
    %1502 = vmatprep.subr.mxu0 0.0
    %1503 = vmatpush1.msra.mxu0 %v1400
    %1504 = vmatprep.subr.mxu0 0.0
    %1505 = vmatpush1.msra.mxu0 %v1401
    %1506 = vmatprep.subr.mxu0 0.0
    %1507 = vmatpush1.msra.mxu0 %v1402
    %1508 = vmatprep.subr.mxu0 0.0
    %1509 = vmatpush1.msra.mxu0 %v1403
    %1510 = vmatprep.subr.mxu0 0.0
    %1511 = vmatpush1.msra.mxu0 %v1404
    %1512 = vmatprep.subr.mxu0 0.0
    %1513 = vmatpush1.msra.mxu0 %v1405
    %1514 = vmatprep.subr.mxu0 0.0
    %1515 = vmatpush1.msra.mxu0 %v1406
    %1516 = vmatprep.subr.mxu0 0.0
    %1517 = vmatpush1.msra.mxu0 %v1407
    %1518 = vmatprep.subr.mxu0 0.0
    %1519 = vmatpush1.msra.mxu0 %v1408
    %1520 = vmatprep.subr.mxu0 0.0
    %1521 = vmatpush1.msra.mxu0 %v1409
    %1522 = vmatprep.subr.mxu0 0.0
    %1523 = vmatpush1.msra.mxu0 %v1410
    %1524 = vmatprep.subr.mxu0 0.0
    %1525 = vmatpush1.msra.mxu0 %v1411
    %1526 = vmatprep.subr.mxu0 0.0
    %1527 = vmatpush1.msra.mxu0 %v1412
    %1528 = vmatprep.subr.mxu0 0.0
    %1529 = vmatpush1.msra.mxu0 %v1413
    %1530 = vmatprep.subr.mxu0 0.0
    %1531 = vmatpush1.msra.mxu0 0.0
    %1532 = vmatprep.subr.mxu0 0.0
    %1533 = vmatpush1.msra.mxu0 0.0
    %1534 = vmatprep.subr.mxu0 0.0
    %1535 = vmatpush1.msra.mxu0 0.0
    %1536 = vmatprep.subr.mxu0 0.0
    %1537 = vmatpush1.msra.mxu0 0.0
    %1538 = vmatprep.subr.mxu0 0.0
    %1539 = vmatpush1.msra.mxu0 0.0
    %1540 = vmatprep.subr.mxu0 0.0
    %1541 = vmatpush1.msra.mxu0 0.0
    %1542 = vmatprep.subr.mxu0 0.0
    %1543 = vmatpush1.msra.mxu0 0.0
    %1544 = vmatprep.subr.mxu0 0.0
    %1545 = vmatpush1.msra.mxu0 0.0
    %1546 = vmatprep.subr.mxu0 0.0
    %1547 = vmatpush1.msra.mxu0 0.0
    %1548 = vmatprep.subr.mxu0 0.0
    %1549 = vmatpush1.msra.mxu0 0.0
    %1550 = vmatprep.subr.mxu0 0.0
    %1551 = vmatpush1.msra.mxu0 0.0
    %1552 = vmatprep.subr.mxu0 0.0
    %1553 = vmatpush1.msra.mxu0 0.0
    %1554 = vmatprep.subr.mxu0 0.0
    %1555 = vmatpush1.msra.mxu0 0.0
    %1556 = vmatprep.subr.mxu0 0.0
    %1557 = vmatpush1.msra.mxu0 0.0
    %1558 = vmatprep.mubr.f32.mxu0 %v1422
    %1559 = vmatmul.mubr.f32.gmra.mrb[0].mxu0 %v1363
    %v1560 = vpop.f32.mrb[0].mxu0
    %v1561 = vadd.f32 %v1491, %v1560
    %v1562 = vpop.f32.mrb[0].mxu0
    %1563 = vdwg.mxu0
    %v1564 = vmax.f32 %v1561, 0.0
    %v1565 = vld [vmem:[%s11] sm:$0xff]
    %v1566 = vld [vmem:[%s11 + $0x8] sm:$0xff]
    %v1567 = vld [vmem:[%s11 + $0x10] sm:$0xff]
    %v1568 = vld [vmem:[%s11 + $0x18] sm:$0xff]
    %v1569 = vld [vmem:[%s11 + $0x20] sm:$0xff]
    %v1570 = vld [vmem:[%s11 + $0x28] sm:$0xff]
    %v1571 = vld [vmem:[%s11 + $0x30] sm:$0xff]
    %v1572 = vld [vmem:[%s11 + $0x38] sm:$0xff]
    %v1573 = vld [vmem:[%s11 + $0x40] sm:$0xff]
    %v1574 = vld [vmem:[%s11 + $0x48] sm:$0xff]
    %v1575 = vld [vmem:[%s11 + $0x50] sm:$0xff]
    %v1576 = vld [vmem:[%s11 + $0x58] sm:$0xff]
    %v1577 = vld [vmem:[%s11 + $0x60] sm:$0xff]
    %v1578 = vld [vmem:[%s11 + $0x68] sm:$0xff]
    %v1579 = vld [vmem:[%s11 + $0x70] sm:$0xff]
    %v1580 = vld [vmem:[%s12] sm:$0x1]
    %v1582 = vlaneseq
    %v1583 = vshrl.u32 %v1582, 7
    %v1584 = vsub.s32 0, %v1583
    %v1585 = vrot.slane %v1580, %v1584
    %vm1587 = vcmask 982016
    %v1589 = vsel %vm1587, %v1564, 0
    %1591 = vmatprep.subr.mxu0 0.0
    %1592 = vmatpush1.msra.mxu0 %v1565
    %1593 = vmatprep.subr.mxu0 0.0
    %1594 = vmatpush1.msra.mxu0 %v1566
    %1595 = vmatprep.subr.mxu0 0.0
    %1596 = vmatpush1.msra.mxu0 %v1567
    %1597 = vmatprep.subr.mxu0 0.0
    %1598 = vmatpush1.msra.mxu0 %v1568
    %1599 = vmatprep.subr.mxu0 0.0
    %1600 = vmatpush1.msra.mxu0 %v1569
    %1601 = vmatprep.subr.mxu0 0.0
    %1602 = vmatpush1.msra.mxu0 %v1570
    %1603 = vmatprep.subr.mxu0 0.0
    %1604 = vmatpush1.msra.mxu0 %v1571
    %1605 = vmatprep.subr.mxu0 0.0
    %1606 = vmatpush1.msra.mxu0 %v1572
    %1607 = vmatprep.subr.mxu0 0.0
    %1608 = vmatpush1.msra.mxu0 %v1573
    %1609 = vmatprep.subr.mxu0 0.0
    %1610 = vmatpush1.msra.mxu0 %v1574
    %1611 = vmatprep.subr.mxu0 0.0
    %1612 = vmatpush1.msra.mxu0 %v1575
    %1613 = vmatprep.subr.mxu0 0.0
    %1614 = vmatpush1.msra.mxu0 %v1576
    %1615 = vmatprep.subr.mxu0 0.0
    %1616 = vmatpush1.msra.mxu0 %v1577
    %1617 = vmatprep.subr.mxu0 0.0
    %1618 = vmatpush1.msra.mxu0 %v1578
    %1619 = vmatprep.subr.mxu0 0.0
    %1620 = vmatpush1.msra.mxu0 %v1579
    %1621 = vmatprep.subr.mxu0 0.0
    %1622 = vmatpush1.msra.mxu0 0.0
    %1623 = vmatprep.subr.mxu0 0.0
    %1624 = vmatpush1.msra.mxu0 0.0
    %1625 = vmatprep.subr.mxu0 0.0
    %1626 = vmatpush1.msra.mxu0 0.0
    %1627 = vmatprep.subr.mxu0 0.0
    %1628 = vmatpush1.msra.mxu0 0.0
    %1629 = vmatprep.subr.mxu0 0.0
    %1630 = vmatpush1.msra.mxu0 0.0
    %1631 = vmatprep.subr.mxu0 0.0
    %1632 = vmatpush1.msra.mxu0 0.0
    %1633 = vmatprep.subr.mxu0 0.0
    %1634 = vmatpush1.msra.mxu0 0.0
    %1635 = vmatprep.subr.mxu0 0.0
    %1636 = vmatpush1.msra.mxu0 0.0
    %1637 = vmatprep.subr.mxu0 0.0
    %1638 = vmatpush1.msra.mxu0 0.0
    %1639 = vmatprep.subr.mxu0 0.0
    %1640 = vmatpush1.msra.mxu0 0.0
    %1641 = vmatprep.subr.mxu0 0.0
    %1642 = vmatpush1.msra.mxu0 0.0
    %1643 = vmatprep.subr.mxu0 0.0
    %1644 = vmatpush1.msra.mxu0 0.0
    %1645 = vmatprep.subr.mxu0 0.0
    %1646 = vmatpush1.msra.mxu0 0.0
    %1647 = vmatprep.subr.mxu0 0.0
    %1648 = vmatpush1.msra.mxu0 0.0
    %1649 = vmatprep.subr.mxu0 0.0
    %1650 = vmatpush1.msra.mxu0 0.0
    %1651 = vmatprep.subr.mxu0 0.0
    %1652 = vmatpush1.msra.mxu0 0.0
    %1653 = vmatprep.subr.mxu0 0.0
    %1654 = vmatpush1.msra.mxu0 0.0
    %1655 = vmatprep.mubr.f32.mxu0 0.0
    %1656 = vmatmul.mubr.f32.gmra.mrb[0].mxu0 %v1589
    %v1657 = vpop.f32.mrb[0].mxu0
    %v1658 = vadd.f32 %v1585, %v1657
    %v1659 = vpop.f32.mrb[0].mxu0
    %1660 = vdwg.mxu0
    %v1661 = vmax.f32 %v1658, 0.0
    %v1662 = vld [vmem:[#allocation12] sm:$0xff]
    %v1663 = vld [vmem:[#allocation12 + $0x8] sm:$0xff]
    %v1664 = vld [vmem:[#allocation12 + $0x10] sm:$0xff]
    %v1665 = vld [vmem:[#allocation12 + $0x18] sm:$0xff]
    %v1666 = vld [vmem:[#allocation12 + $0x20] sm:$0xff]
    %v1667 = vld [vmem:[#allocation12 + $0x28] sm:$0xff]
    %v1668 = vld [vmem:[#allocation12 + $0x30] sm:$0xff]
    %v1669 = vld [vmem:[#allocation12 + $0x38] sm:$0xff]
    %v1670 = vld [vmem:[#allocation12 + $0x40] sm:$0xff]
    %v1671 = vld [vmem:[#allocation12 + $0x48] sm:$0xff]
    %v1672 = vld [vmem:[#allocation12 + $0x50] sm:$0xf]
    %v1673 = vld [vmem:[%s14] sm:$0x1]
    %v1675 = vlaneseq
    %v1676 = vshrl.u32 %v1675, 7
    %v1677 = vsub.s32 0, %v1676
    %v1678 = vrot.slane %v1673, %v1677
    %v1681 = vsel %vm285, %v1661, 0
    %v1684 = vsel %vm307, %v1672, 0
    %1686 = vmatprep.subr.mxu0 0.0
    %1687 = vmatpush1.msra.mxu0 %v1662
    %1688 = vmatprep.subr.mxu0 0.0
    %1689 = vmatpush1.msra.mxu0 %v1663
    %1690 = vmatprep.subr.mxu0 0.0
    %1691 = vmatpush1.msra.mxu0 %v1664
    %1692 = vmatprep.subr.mxu0 0.0
    %1693 = vmatpush1.msra.mxu0 %v1665
    %1694 = vmatprep.subr.mxu0 0.0
    %1695 = vmatpush1.msra.mxu0 %v1666
    %1696 = vmatprep.subr.mxu0 0.0
    %1697 = vmatpush1.msra.mxu0 %v1667
    %1698 = vmatprep.subr.mxu0 0.0
    %1699 = vmatpush1.msra.mxu0 %v1668
    %1700 = vmatprep.subr.mxu0 0.0
    %1701 = vmatpush1.msra.mxu0 %v1669
    %1702 = vmatprep.subr.mxu0 0.0
    %1703 = vmatpush1.msra.mxu0 %v1670
    %1704 = vmatprep.subr.mxu0 0.0
    %1705 = vmatpush1.msra.mxu0 %v1671
    %1706 = vmatprep.subr.mxu0 0.0
    %1707 = vmatpush1.msra.mxu0 %v1684
    %1708 = vmatprep.subr.mxu0 0.0
    %1709 = vmatpush1.msra.mxu0 0.0
    %1710 = vmatprep.subr.mxu0 0.0
    %1711 = vmatpush1.msra.mxu0 0.0
    %1712 = vmatprep.subr.mxu0 0.0
    %1713 = vmatpush1.msra.mxu0 0.0
    %1714 = vmatprep.subr.mxu0 0.0
    %1715 = vmatpush1.msra.mxu0 0.0
    %1716 = vmatprep.subr.mxu0 0.0
    %1717 = vmatpush1.msra.mxu0 0.0
    %1718 = vmatprep.subr.mxu0 0.0
    %1719 = vmatpush1.msra.mxu0 0.0
    %1720 = vmatprep.subr.mxu0 0.0
    %1721 = vmatpush1.msra.mxu0 0.0
    %1722 = vmatprep.subr.mxu0 0.0
    %1723 = vmatpush1.msra.mxu0 0.0
    %1724 = vmatprep.subr.mxu0 0.0
    %1725 = vmatpush1.msra.mxu0 0.0
    %1726 = vmatprep.subr.mxu0 0.0
    %1727 = vmatpush1.msra.mxu0 0.0
    %1728 = vmatprep.subr.mxu0 0.0
    %1729 = vmatpush1.msra.mxu0 0.0
    %1730 = vmatprep.subr.mxu0 0.0
    %1731 = vmatpush1.msra.mxu0 0.0
    %1732 = vmatprep.subr.mxu0 0.0
    %1733 = vmatpush1.msra.mxu0 0.0
    %1734 = vmatprep.subr.mxu0 0.0
    %1735 = vmatpush1.msra.mxu0 0.0
    %1736 = vmatprep.subr.mxu0 0.0
    %1737 = vmatpush1.msra.mxu0 0.0
    %1738 = vmatprep.subr.mxu0 0.0
    %1739 = vmatpush1.msra.mxu0 0.0
    %1740 = vmatprep.subr.mxu0 0.0
    %1741 = vmatpush1.msra.mxu0 0.0
    %1742 = vmatprep.subr.mxu0 0.0
    %1743 = vmatpush1.msra.mxu0 0.0
    %1744 = vmatprep.subr.mxu0 0.0
    %1745 = vmatpush1.msra.mxu0 0.0
    %1746 = vmatprep.subr.mxu0 0.0
    %1747 = vmatpush1.msra.mxu0 0.0
    %1748 = vmatprep.subr.mxu0 0.0
    %1749 = vmatpush1.msra.mxu0 0.0
    %1750 = vmatprep.mubr.f32.mxu0 0.0
    %1751 = vmatmul.mubr.f32.gmra.mrb[0].mxu0 %v1681
    %v1752 = vpop.f32.mrb[0].mxu0
    %v1753 = vadd.f32 %v1678, %v1752
    %v1754 = vpop.f32.mrb[0].mxu0
    %1755 = vdwg.mxu0
    %1756 = vst [vmem:[%s15] sm:$0xff] %v1753
    // Predicated region
    $region90: #{forward.1} parent=1 // pred_check
      _
    $region91: #{forward.1} parent=1 // pred_check_branch
      %1758 = sbr.rel (0) target = $region93
    $region92: #{forward.1} parent=1 // pred_region
      _
    $region93: #{forward.1} parent=1 // pred_fallthru
      _
    // Predicated region
    $region94: #{forward.1} parent=1 // pred_check
      _
    $region95: #{forward.1} parent=1 // pred_check_branch
      %1760 = sbr.rel (0) target = $region97
    $region96: #{forward.1} parent=1 // pred_region
      _
    $region97: #{forward.1} parent=1 // pred_fallthru
      _
    %1761 = vsyncpa [#allocation3], 1
    %1762 = vsyncpa [#allocation5], 1
    %1763 = vsyncpa [#allocation8], 1
    %1764 = vsyncpa [#allocation11], 1

</llo_original>
